<compile_context>
chip_gen: v7x
topology: tpu7x:2x2x1
jax: 0.10.0
libtpu: 0.0.40
codegen_flags: <defaults>
</compile_context>

<pallas_src>
import functools

import jax
import jax.numpy as jnp
from jax.experimental import pallas as pl
from jax.experimental.pallas import tpu as pltpu

EPS = 1e-5


def _reduce_leading(t):
    # (N, Ch, 1) -> (1, Ch, 1) without a leading-axis vector reduce (N is tiny
    # and static, so an unrolled add chain is the safest/cheapest lowering).
    r = t[0:1]
    for i in range(1, t.shape[0]):
        r = r + t[i:i + 1]
    return r


def _batchnorm(x, gamma, beta, relu):
    # x: (N, Ch, P); gamma/beta: (1, Ch, 1).  Training-mode BatchNorm (batch
    # stats over N and P, biased variance).  Single pass: sum + sum-of-squares.
    n = x.shape[0] * x.shape[2]
    s = _reduce_leading(jnp.sum(x, axis=2, keepdims=True))
    ss = _reduce_leading(jnp.sum(x * x, axis=2, keepdims=True))
    mu = s * (1.0 / n)
    var = ss * (1.0 / n) - mu * mu
    y = (x - mu) * jax.lax.rsqrt(var + EPS) * gamma + beta
    if relu:
        y = jnp.maximum(y, 0.0)
    return y
    # TODO(synk): running_mean / running_var buffer updates (a training-mode
    # side effect) are not reproduced; they do not affect the forward output.


def inverted_residual_kernel(x_ref, w1_ref, g1_ref, b1_ref,
                             w2_ref, cb2_ref, g2_ref, b2_ref,
                             w3_ref, g3_ref, b3_ref,
                             out_ref, *, H, W):
    N, C, P = x_ref.shape            # P = H * W, the lane (dense) axis
    Hd = w1_ref.shape[1]

    # ---- conv1: 1x1 pointwise (C -> Hd) as VPU broadcast-MAC ----
    w1 = w1_ref[...]                                     # (C, Hd, 1)
    h = jnp.zeros((N, Hd, P), jnp.float32)
    for c in range(C):
        xc = x_ref[:, pl.ds(c, 1), :].astype(jnp.float32)   # (N, 1, P)
        h = h + xc * w1[c:c + 1]                             # (1, Hd, 1) bcast

    # ---- norm1 + relu ----
    h = _batchnorm(h, g1_ref[...], b1_ref[...], relu=True)

    # ---- conv2: 3x3 depthwise, padding=1, groups=Hd -------------------------
    # Shift-accumulate with pltpu.roll along the flattened spatial lane axis
    # (shift by +/-1 for kw, by +/-W for kh) + edge masks (zero padding).
    hr = h.reshape(N * Hd, P)            # row = n*Hd + hd, lane = y*W + x
    pidx = jax.lax.broadcasted_iota(jnp.int32, (1, P), 1)
    if (W & (W - 1)) == 0:               # W is a power of two here
        w_in_row = jnp.bitwise_and(pidx, W - 1)
    else:                                # pragma: no cover (generic fallback)
        w_in_row = jax.lax.rem(pidx, W)
    m_w_ge1 = w_in_row >= 1              # valid when dw == -1
    m_w_le = w_in_row <= W - 2           # valid when dw == +1
    m_h_ge1 = pidx >= W                  # valid when dh == -1
    m_h_le = pidx < (H - 1) * W          # valid when dh == +1

    # Per-row tap weights, hoisted out of the 9-tap loop: (9, N*Hd, 1).
    w2 = jnp.tile(w2_ref[...], (1, N, 1))
    cb2 = cb2_ref[...]                                   # (1, Hd, 1)

    acc = jnp.zeros((N * Hd, P), jnp.float32)
    for kh in range(3):
        for kw in range(3):
            dh, dw = kh - 1, kw - 1
            d = dh * W + dw
            sh = hr if d == 0 else pltpu.roll(hr, shift=(-d) % P, axis=1)
            masks = []
            if dh == -1:
                masks.append(m_h_ge1)
            if dh == 1:
                masks.append(m_h_le)
            if dw == -1:
                masks.append(m_w_ge1)
            if dw == 1:
                masks.append(m_w_le)
            if masks:
                valid = masks[0]
                for m in masks[1:]:
                    valid = jnp.logical_and(valid, m)
                sh = jnp.where(valid, sh, 0.0)
            acc = acc + sh * w2[kh * 3 + kw]
    h = acc.reshape(N, Hd, P) + cb2                      # conv2 bias

    # ---- norm2 + relu ----
    h = _batchnorm(h, g2_ref[...], b2_ref[...], relu=True)

    # ---- conv3: 1x1 pointwise (Hd -> C) as VPU broadcast-MAC ----
    w3 = w3_ref[...]                                     # (Hd, C, 1)
    y = jnp.zeros((N, C, P), jnp.float32)
    for hd in range(Hd):
        y = y + h[:, hd:hd + 1, :] * w3[hd:hd + 1]

    # ---- norm3 (no relu) + residual ----
    y = _batchnorm(y, g3_ref[...], b3_ref[...], relu=False)
    # Re-read x only here (short live range), store as a lane-dense slab.
    res = y + x_ref[...].astype(jnp.float32)
    out_ref[...] = res.reshape(N * C, P).astype(out_ref.dtype)


@jax.jit
def inverted_residual(x_nchw, w1, g1, b1, w2, cb2, g2, b2, w3, g3, b3):
    N, C, H, W = x_nchw.shape
    P = H * W
    # NCHW -> (N, C, H*W) is a free reshape (no transpose): lanes = spatial.
    x = x_nchw.reshape(N, C, P).astype(jnp.float32)

    vmem = pl.BlockSpec(memory_space=pltpu.MemorySpace.VMEM)
    kernel = functools.partial(inverted_residual_kernel, H=H, W=W)
    out = pl.pallas_call(
        kernel,
        out_shape=jax.ShapeDtypeStruct((N * C, P), jnp.float32),
        in_specs=[vmem] * 11,
        out_specs=vmem,
        # Everything fits comfortably in VMEM at these shapes (a few hundred
        # KiB), so a single grid-less invocation is used.
        # TODO(synk): at real MobileNet sizes, tile over N/H-row blocks with a
        # two-pass BN (sum/sumsq accumulators + finalize pass) and mark the
        # row axis "parallel" so v7x can shard it across its 2 TensorCores.
    )(x, w1, g1, b1, w2, cb2, g2, b2, w3, g3, b3)

    # (N*C, H*W) -> NCHW is again a free reshape.
    return out.reshape(N, C, H, W)


def make_params(key, inp_channels, expand_ratio):
    hidden = int(round(inp_channels * expand_ratio))
    k1, k2, k3, k4 = jax.random.split(key, 4)
    # conv1: torch [hidden, C, 1, 1] -> kernel layout [C, hidden, 1]
    w1 = 0.1 * jax.random.normal(k1, (inp_channels, hidden, 1), jnp.float32)
    g1 = jnp.ones((1, hidden, 1), jnp.float32)       # BN default gamma=1
    b1 = jnp.zeros((1, hidden, 1), jnp.float32)      # BN default beta=0
    # conv2 (depthwise): torch [hidden, 1, 3, 3] -> [9, hidden, 1] (tap-major)
    w2 = 0.1 * jax.random.normal(k2, (9, hidden, 1), jnp.float32)
    cb2 = 0.1 * jax.random.normal(k3, (1, hidden, 1), jnp.float32)
    g2 = jnp.ones((1, hidden, 1), jnp.float32)
    b2 = jnp.zeros((1, hidden, 1), jnp.float32)
    # conv3: torch [C, hidden, 1, 1] -> [hidden, C, 1]
    w3 = 0.1 * jax.random.normal(k4, (hidden, inp_channels, 1), jnp.float32)
    g3 = jnp.ones((1, inp_channels, 1), jnp.float32)
    b3 = jnp.zeros((1, inp_channels, 1), jnp.float32)
    return w1, g1, b1, w2, cb2, g2, b2, w3, g3, b3


# ---- pure-JAX reference (NCHW) for a correctness self-check -----------------
def _bn_ref(x, gamma, beta, relu):
    mu = jnp.mean(x, axis=(0, 2, 3), keepdims=True)
    var = jnp.mean(jnp.square(x - mu), axis=(0, 2, 3), keepdims=True)
    y = (x - mu) * jax.lax.rsqrt(var + EPS) * gamma.reshape(1, -1, 1, 1) \
        + beta.reshape(1, -1, 1, 1)
    return jnp.maximum(y, 0.0) if relu else y


def reference(x, w1, g1, b1, w2, cb2, g2, b2, w3, g3, b3):
    N, C, H, W = x.shape
    Hd = w1.shape[1]
    h = jnp.einsum('nchw,cd->ndhw', x, w1[..., 0])
    h = _bn_ref(h, g1[0, :, 0], b1[0, :, 0], True)
    hp = jnp.pad(h, ((0, 0), (0, 0), (1, 1), (1, 1)))
    acc = jnp.zeros_like(h)
    for kh in range(3):
        for kw in range(3):
            acc = acc + hp[:, :, kh:kh + H, kw:kw + W] \
                * w2[kh * 3 + kw, :, 0].reshape(1, Hd, 1, 1)
    acc = acc + cb2[0, :, 0].reshape(1, Hd, 1, 1)
    h = _bn_ref(acc, g2[0, :, 0], b2[0, :, 0], True)
    y = jnp.einsum('ndhw,dc->nchw', h, w3[..., 0])
    y = _bn_ref(y, g3[0, :, 0], b3[0, :, 0], False)
    return y + x


if __name__ == "__main__":
    key = jax.random.PRNGKey(0)
    kx, kp = jax.random.split(key)

    # InvertedResidual(inp_channels=4, expand_ratio=4) -> hidden_dim = 16
    N, C, H, W = 2, 4, 16, 16
    x = jax.random.normal(kx, (N, C, H, W), jnp.float32)   # NCHW like PyTorch
    params = make_params(kp, inp_channels=C, expand_ratio=4)

    out = inverted_residual(x, *params)
    jax.block_until_ready(out)
    assert out.shape == (N, C, H, W), out.shape

    ref = reference(x, *params)
    assert jnp.allclose(out, ref, rtol=1e-3, atol=1e-3), \
        float(jnp.max(jnp.abs(out - ref)))
    print("KERNEL_OK")
</pallas_src>

<mosaic_0001>
module attributes {stable_mosaic.version = 11 : i64} {
  func.func @inverted_residual_kernel(%arg0: memref<2x4x256xf32, #tpu.memory_space<vmem>>, %arg1: memref<4x16x1xf32, #tpu.memory_space<vmem>>, %arg2: memref<1x16x1xf32, #tpu.memory_space<vmem>>, %arg3: memref<1x16x1xf32, #tpu.memory_space<vmem>>, %arg4: memref<9x16x1xf32, #tpu.memory_space<vmem>>, %arg5: memref<1x16x1xf32, #tpu.memory_space<vmem>>, %arg6: memref<1x16x1xf32, #tpu.memory_space<vmem>>, %arg7: memref<1x16x1xf32, #tpu.memory_space<vmem>>, %arg8: memref<16x4x1xf32, #tpu.memory_space<vmem>>, %arg9: memref<1x4x1xf32, #tpu.memory_space<vmem>>, %arg10: memref<1x4x1xf32, #tpu.memory_space<vmem>>, %arg11: memref<8x256xf32, #tpu.memory_space<vmem>>) attributes {dimension_semantics = [], scalar_prefetch = 0 : i64, scratch_operands = 0 : i64, tpu.core_type = #tpu.core_type<tc>} {
    %c0 = arith.constant 0 : index
    %c0_0 = arith.constant 0 : index
    %c0_1 = arith.constant 0 : index
    %0 = vector.load %arg1[%c0, %c0_0, %c0_1] : memref<4x16x1xf32, #tpu.memory_space<vmem>>, vector<4x16x1xf32>
    %cst = arith.constant 0.000000e+00 : f32
    %1 = vector.broadcast %cst : f32 to vector<2x16x256xf32>
    %c0_2 = arith.constant 0 : index
    %c0_3 = arith.constant 0 : index
    %c0_4 = arith.constant 0 : index
    %2 = vector.load %arg0[%c0_2, %c0_3, %c0_4] : memref<2x4x256xf32, #tpu.memory_space<vmem>>, vector<2x1x256xf32>
    %3 = vector.extract_strided_slice %0 {offsets = [0, 0, 0], sizes = [1, 16, 1], strides = [1, 1, 1]} : vector<4x16x1xf32> to vector<1x16x1xf32>
    %4 = vector.broadcast %2 : vector<2x1x256xf32> to vector<2x16x256xf32>
    %5 = vector.broadcast %3 : vector<1x16x1xf32> to vector<2x16x256xf32>
    %6 = arith.mulf %4, %5 : vector<2x16x256xf32>
    %7 = arith.addf %1, %6 : vector<2x16x256xf32>
    %c0_5 = arith.constant 0 : index
    %c1 = arith.constant 1 : index
    %c0_6 = arith.constant 0 : index
    %8 = vector.load %arg0[%c0_5, %c1, %c0_6] : memref<2x4x256xf32, #tpu.memory_space<vmem>>, vector<2x1x256xf32>
    %9 = vector.extract_strided_slice %0 {offsets = [1, 0, 0], sizes = [1, 16, 1], strides = [1, 1, 1]} : vector<4x16x1xf32> to vector<1x16x1xf32>
    %10 = vector.broadcast %8 : vector<2x1x256xf32> to vector<2x16x256xf32>
    %11 = vector.broadcast %9 : vector<1x16x1xf32> to vector<2x16x256xf32>
    %12 = arith.mulf %10, %11 : vector<2x16x256xf32>
    %13 = arith.addf %7, %12 : vector<2x16x256xf32>
    %c0_7 = arith.constant 0 : index
    %c2 = arith.constant 2 : index
    %c0_8 = arith.constant 0 : index
    %14 = vector.load %arg0[%c0_7, %c2, %c0_8] : memref<2x4x256xf32, #tpu.memory_space<vmem>>, vector<2x1x256xf32>
    %15 = vector.extract_strided_slice %0 {offsets = [2, 0, 0], sizes = [1, 16, 1], strides = [1, 1, 1]} : vector<4x16x1xf32> to vector<1x16x1xf32>
    %16 = vector.broadcast %14 : vector<2x1x256xf32> to vector<2x16x256xf32>
    %17 = vector.broadcast %15 : vector<1x16x1xf32> to vector<2x16x256xf32>
    %18 = arith.mulf %16, %17 : vector<2x16x256xf32>
    %19 = arith.addf %13, %18 : vector<2x16x256xf32>
    %c0_9 = arith.constant 0 : index
    %c3 = arith.constant 3 : index
    %c0_10 = arith.constant 0 : index
    %20 = vector.load %arg0[%c0_9, %c3, %c0_10] : memref<2x4x256xf32, #tpu.memory_space<vmem>>, vector<2x1x256xf32>
    %21 = vector.extract_strided_slice %0 {offsets = [3, 0, 0], sizes = [1, 16, 1], strides = [1, 1, 1]} : vector<4x16x1xf32> to vector<1x16x1xf32>
    %22 = vector.broadcast %20 : vector<2x1x256xf32> to vector<2x16x256xf32>
    %23 = vector.broadcast %21 : vector<1x16x1xf32> to vector<2x16x256xf32>
    %24 = arith.mulf %22, %23 : vector<2x16x256xf32>
    %25 = arith.addf %19, %24 : vector<2x16x256xf32>
    %c0_11 = arith.constant 0 : index
    %c0_12 = arith.constant 0 : index
    %c0_13 = arith.constant 0 : index
    %26 = vector.load %arg2[%c0_11, %c0_12, %c0_13] : memref<1x16x1xf32, #tpu.memory_space<vmem>>, vector<1x16x1xf32>
    %c0_14 = arith.constant 0 : index
    %c0_15 = arith.constant 0 : index
    %c0_16 = arith.constant 0 : index
    %27 = vector.load %arg3[%c0_14, %c0_15, %c0_16] : memref<1x16x1xf32, #tpu.memory_space<vmem>>, vector<1x16x1xf32>
    %cst_17 = arith.constant dense<0.000000e+00> : vector<2x16xf32>
    %28 = vector.multi_reduction <add>, %25, %cst_17 [2] : vector<2x16x256xf32> to vector<2x16xf32>
    %29 = vector.shape_cast %28 : vector<2x16xf32> to vector<2x16x1xf32>
    %30 = vector.extract_strided_slice %29 {offsets = [0, 0, 0], sizes = [1, 16, 1], strides = [1, 1, 1]} : vector<2x16x1xf32> to vector<1x16x1xf32>
    %31 = vector.extract_strided_slice %29 {offsets = [1, 0, 0], sizes = [1, 16, 1], strides = [1, 1, 1]} : vector<2x16x1xf32> to vector<1x16x1xf32>
    %32 = arith.addf %30, %31 : vector<1x16x1xf32>
    %33 = arith.mulf %25, %25 : vector<2x16x256xf32>
    %cst_18 = arith.constant dense<0.000000e+00> : vector<2x16xf32>
    %34 = vector.multi_reduction <add>, %33, %cst_18 [2] : vector<2x16x256xf32> to vector<2x16xf32>
    %35 = vector.shape_cast %34 : vector<2x16xf32> to vector<2x16x1xf32>
    %36 = vector.extract_strided_slice %35 {offsets = [0, 0, 0], sizes = [1, 16, 1], strides = [1, 1, 1]} : vector<2x16x1xf32> to vector<1x16x1xf32>
    %37 = vector.extract_strided_slice %35 {offsets = [1, 0, 0], sizes = [1, 16, 1], strides = [1, 1, 1]} : vector<2x16x1xf32> to vector<1x16x1xf32>
    %38 = arith.addf %36, %37 : vector<1x16x1xf32>
    %cst_19 = arith.constant 0.001953125 : f32
    %39 = vector.broadcast %cst_19 : f32 to vector<1x16x1xf32>
    %40 = arith.mulf %32, %39 : vector<1x16x1xf32>
    %cst_20 = arith.constant 0.001953125 : f32
    %41 = vector.broadcast %cst_20 : f32 to vector<1x16x1xf32>
    %42 = arith.mulf %38, %41 : vector<1x16x1xf32>
    %43 = arith.mulf %40, %40 : vector<1x16x1xf32>
    %44 = arith.subf %42, %43 : vector<1x16x1xf32>
    %45 = vector.broadcast %40 : vector<1x16x1xf32> to vector<2x16x256xf32>
    %46 = arith.subf %25, %45 : vector<2x16x256xf32>
    %cst_21 = arith.constant 9.99999974E-6 : f32
    %47 = vector.broadcast %cst_21 : f32 to vector<1x16x1xf32>
    %48 = arith.addf %44, %47 : vector<1x16x1xf32>
    %49 = math.rsqrt %48 : vector<1x16x1xf32>
    %50 = vector.broadcast %49 : vector<1x16x1xf32> to vector<2x16x256xf32>
    %51 = arith.mulf %46, %50 : vector<2x16x256xf32>
    %52 = vector.broadcast %26 : vector<1x16x1xf32> to vector<2x16x256xf32>
    %53 = arith.mulf %51, %52 : vector<2x16x256xf32>
    %54 = vector.broadcast %27 : vector<1x16x1xf32> to vector<2x16x256xf32>
    %55 = arith.addf %53, %54 : vector<2x16x256xf32>
    %cst_22 = arith.constant 0.000000e+00 : f32
    %56 = vector.broadcast %cst_22 : f32 to vector<2x16x256xf32>
    %57 = arith.maximumf %55, %56 : vector<2x16x256xf32>
    %58 = vector.shape_cast %57 : vector<2x16x256xf32> to vector<32x256xf32>
    %59 = tpu.iota {dimensions = array<i32: 1>} : vector<1x256xi32>
    %c15_i32 = arith.constant 15 : i32
    %60 = vector.broadcast %c15_i32 : i32 to vector<1x256xi32>
    %61 = arith.andi %59, %60 : vector<1x256xi32>
    %c1_i32 = arith.constant 1 : i32
    %62 = vector.broadcast %c1_i32 : i32 to vector<1x256xi32>
    %63 = arith.cmpi sge, %61, %62 : vector<1x256xi32>
    %c14_i32 = arith.constant 14 : i32
    %64 = vector.broadcast %c14_i32 : i32 to vector<1x256xi32>
    %65 = arith.cmpi sle, %61, %64 : vector<1x256xi32>
    %c16_i32 = arith.constant 16 : i32
    %66 = vector.broadcast %c16_i32 : i32 to vector<1x256xi32>
    %67 = arith.cmpi sge, %59, %66 : vector<1x256xi32>
    %c240_i32 = arith.constant 240 : i32
    %68 = vector.broadcast %c240_i32 : i32 to vector<1x256xi32>
    %69 = arith.cmpi slt, %59, %68 : vector<1x256xi32>
    %c0_23 = arith.constant 0 : index
    %c0_24 = arith.constant 0 : index
    %c0_25 = arith.constant 0 : index
    %70 = vector.load %arg4[%c0_23, %c0_24, %c0_25] : memref<9x16x1xf32, #tpu.memory_space<vmem>>, vector<9x16x1xf32>
    %71 = tpu.concatenate %70, %70 in 1 : vector<9x16x1xf32>, vector<9x16x1xf32> -> vector<9x32x1xf32>
    %c0_26 = arith.constant 0 : index
    %c0_27 = arith.constant 0 : index
    %c0_28 = arith.constant 0 : index
    %72 = vector.load %arg5[%c0_26, %c0_27, %c0_28] : memref<1x16x1xf32, #tpu.memory_space<vmem>>, vector<1x16x1xf32>
    %cst_29 = arith.constant 0.000000e+00 : f32
    %73 = vector.broadcast %cst_29 : f32 to vector<32x256xf32>
    %c17_i32 = arith.constant 17 : i32
    %74 = tpu.dynamic_rotate %58 by %c17_i32 dim 1 : vector<32x256xf32>, i32 -> vector<32x256xf32>
    %75 = arith.andi %67, %63 : vector<1x256xi1>
    %cst_30 = arith.constant 0.000000e+00 : f32
    %76 = vector.shape_cast %75 : vector<1x256xi1> to vector<1x256xi1>
    %77 = vector.broadcast %76 : vector<1x256xi1> to vector<32x256xi1>
    %78 = vector.broadcast %cst_30 : f32 to vector<32x256xf32>
    %79 = arith.select %77, %74, %78 : vector<32x256xi1>, vector<32x256xf32>
    %80 = vector.extract_strided_slice %71 {offsets = [0, 0, 0], sizes = [1, 32, 1], strides = [1, 1, 1]} : vector<9x32x1xf32> to vector<1x32x1xf32>
    %81 = vector.shape_cast %80 : vector<1x32x1xf32> to vector<32x1xf32>
    %82 = vector.broadcast %81 : vector<32x1xf32> to vector<32x256xf32>
    %83 = arith.mulf %79, %82 : vector<32x256xf32>
    %84 = arith.addf %73, %83 : vector<32x256xf32>
    %c16_i32_31 = arith.constant 16 : i32
    %85 = tpu.dynamic_rotate %58 by %c16_i32_31 dim 1 : vector<32x256xf32>, i32 -> vector<32x256xf32>
    %cst_32 = arith.constant 0.000000e+00 : f32
    %86 = vector.shape_cast %67 : vector<1x256xi1> to vector<1x256xi1>
    %87 = vector.broadcast %86 : vector<1x256xi1> to vector<32x256xi1>
    %88 = vector.broadcast %cst_32 : f32 to vector<32x256xf32>
    %89 = arith.select %87, %85, %88 : vector<32x256xi1>, vector<32x256xf32>
    %90 = vector.extract_strided_slice %71 {offsets = [1, 0, 0], sizes = [1, 32, 1], strides = [1, 1, 1]} : vector<9x32x1xf32> to vector<1x32x1xf32>
    %91 = vector.shape_cast %90 : vector<1x32x1xf32> to vector<32x1xf32>
    %92 = vector.broadcast %91 : vector<32x1xf32> to vector<32x256xf32>
    %93 = arith.mulf %89, %92 : vector<32x256xf32>
    %94 = arith.addf %84, %93 : vector<32x256xf32>
    %c15_i32_33 = arith.constant 15 : i32
    %95 = tpu.dynamic_rotate %58 by %c15_i32_33 dim 1 : vector<32x256xf32>, i32 -> vector<32x256xf32>
    %96 = arith.andi %67, %65 : vector<1x256xi1>
    %cst_34 = arith.constant 0.000000e+00 : f32
    %97 = vector.shape_cast %96 : vector<1x256xi1> to vector<1x256xi1>
    %98 = vector.broadcast %97 : vector<1x256xi1> to vector<32x256xi1>
    %99 = vector.broadcast %cst_34 : f32 to vector<32x256xf32>
    %100 = arith.select %98, %95, %99 : vector<32x256xi1>, vector<32x256xf32>
    %101 = vector.extract_strided_slice %71 {offsets = [2, 0, 0], sizes = [1, 32, 1], strides = [1, 1, 1]} : vector<9x32x1xf32> to vector<1x32x1xf32>
    %102 = vector.shape_cast %101 : vector<1x32x1xf32> to vector<32x1xf32>
    %103 = vector.broadcast %102 : vector<32x1xf32> to vector<32x256xf32>
    %104 = arith.mulf %100, %103 : vector<32x256xf32>
    %105 = arith.addf %94, %104 : vector<32x256xf32>
    %c1_i32_35 = arith.constant 1 : i32
    %106 = tpu.dynamic_rotate %58 by %c1_i32_35 dim 1 : vector<32x256xf32>, i32 -> vector<32x256xf32>
    %cst_36 = arith.constant 0.000000e+00 : f32
    %107 = vector.shape_cast %63 : vector<1x256xi1> to vector<1x256xi1>
    %108 = vector.broadcast %107 : vector<1x256xi1> to vector<32x256xi1>
    %109 = vector.broadcast %cst_36 : f32 to vector<32x256xf32>
    %110 = arith.select %108, %106, %109 : vector<32x256xi1>, vector<32x256xf32>
    %111 = vector.extract_strided_slice %71 {offsets = [3, 0, 0], sizes = [1, 32, 1], strides = [1, 1, 1]} : vector<9x32x1xf32> to vector<1x32x1xf32>
    %112 = vector.shape_cast %111 : vector<1x32x1xf32> to vector<32x1xf32>
    %113 = vector.broadcast %112 : vector<32x1xf32> to vector<32x256xf32>
    %114 = arith.mulf %110, %113 : vector<32x256xf32>
    %115 = arith.addf %105, %114 : vector<32x256xf32>
    %116 = vector.extract_strided_slice %71 {offsets = [4, 0, 0], sizes = [1, 32, 1], strides = [1, 1, 1]} : vector<9x32x1xf32> to vector<1x32x1xf32>
    %117 = vector.shape_cast %116 : vector<1x32x1xf32> to vector<32x1xf32>
    %118 = vector.broadcast %117 : vector<32x1xf32> to vector<32x256xf32>
    %119 = arith.mulf %58, %118 : vector<32x256xf32>
    %120 = arith.addf %115, %119 : vector<32x256xf32>
    %c255_i32 = arith.constant 255 : i32
    %121 = tpu.dynamic_rotate %58 by %c255_i32 dim 1 : vector<32x256xf32>, i32 -> vector<32x256xf32>
    %cst_37 = arith.constant 0.000000e+00 : f32
    %122 = vector.shape_cast %65 : vector<1x256xi1> to vector<1x256xi1>
    %123 = vector.broadcast %122 : vector<1x256xi1> to vector<32x256xi1>
    %124 = vector.broadcast %cst_37 : f32 to vector<32x256xf32>
    %125 = arith.select %123, %121, %124 : vector<32x256xi1>, vector<32x256xf32>
    %126 = vector.extract_strided_slice %71 {offsets = [5, 0, 0], sizes = [1, 32, 1], strides = [1, 1, 1]} : vector<9x32x1xf32> to vector<1x32x1xf32>
    %127 = vector.shape_cast %126 : vector<1x32x1xf32> to vector<32x1xf32>
    %128 = vector.broadcast %127 : vector<32x1xf32> to vector<32x256xf32>
    %129 = arith.mulf %125, %128 : vector<32x256xf32>
    %130 = arith.addf %120, %129 : vector<32x256xf32>
    %c241_i32 = arith.constant 241 : i32
    %131 = tpu.dynamic_rotate %58 by %c241_i32 dim 1 : vector<32x256xf32>, i32 -> vector<32x256xf32>
    %132 = arith.andi %69, %63 : vector<1x256xi1>
    %cst_38 = arith.constant 0.000000e+00 : f32
    %133 = vector.shape_cast %132 : vector<1x256xi1> to vector<1x256xi1>
    %134 = vector.broadcast %133 : vector<1x256xi1> to vector<32x256xi1>
    %135 = vector.broadcast %cst_38 : f32 to vector<32x256xf32>
    %136 = arith.select %134, %131, %135 : vector<32x256xi1>, vector<32x256xf32>
    %137 = vector.extract_strided_slice %71 {offsets = [6, 0, 0], sizes = [1, 32, 1], strides = [1, 1, 1]} : vector<9x32x1xf32> to vector<1x32x1xf32>
    %138 = vector.shape_cast %137 : vector<1x32x1xf32> to vector<32x1xf32>
    %139 = vector.broadcast %138 : vector<32x1xf32> to vector<32x256xf32>
    %140 = arith.mulf %136, %139 : vector<32x256xf32>
    %141 = arith.addf %130, %140 : vector<32x256xf32>
    %c240_i32_39 = arith.constant 240 : i32
    %142 = tpu.dynamic_rotate %58 by %c240_i32_39 dim 1 : vector<32x256xf32>, i32 -> vector<32x256xf32>
    %cst_40 = arith.constant 0.000000e+00 : f32
    %143 = vector.shape_cast %69 : vector<1x256xi1> to vector<1x256xi1>
    %144 = vector.broadcast %143 : vector<1x256xi1> to vector<32x256xi1>
    %145 = vector.broadcast %cst_40 : f32 to vector<32x256xf32>
    %146 = arith.select %144, %142, %145 : vector<32x256xi1>, vector<32x256xf32>
    %147 = vector.extract_strided_slice %71 {offsets = [7, 0, 0], sizes = [1, 32, 1], strides = [1, 1, 1]} : vector<9x32x1xf32> to vector<1x32x1xf32>
    %148 = vector.shape_cast %147 : vector<1x32x1xf32> to vector<32x1xf32>
    %149 = vector.broadcast %148 : vector<32x1xf32> to vector<32x256xf32>
    %150 = arith.mulf %146, %149 : vector<32x256xf32>
    %151 = arith.addf %141, %150 : vector<32x256xf32>
    %c239_i32 = arith.constant 239 : i32
    %152 = tpu.dynamic_rotate %58 by %c239_i32 dim 1 : vector<32x256xf32>, i32 -> vector<32x256xf32>
    %153 = arith.andi %69, %65 : vector<1x256xi1>
    %cst_41 = arith.constant 0.000000e+00 : f32
    %154 = vector.shape_cast %153 : vector<1x256xi1> to vector<1x256xi1>
    %155 = vector.broadcast %154 : vector<1x256xi1> to vector<32x256xi1>
    %156 = vector.broadcast %cst_41 : f32 to vector<32x256xf32>
    %157 = arith.select %155, %152, %156 : vector<32x256xi1>, vector<32x256xf32>
    %158 = vector.extract_strided_slice %71 {offsets = [8, 0, 0], sizes = [1, 32, 1], strides = [1, 1, 1]} : vector<9x32x1xf32> to vector<1x32x1xf32>
    %159 = vector.shape_cast %158 : vector<1x32x1xf32> to vector<32x1xf32>
    %160 = vector.broadcast %159 : vector<32x1xf32> to vector<32x256xf32>
    %161 = arith.mulf %157, %160 : vector<32x256xf32>
    %162 = arith.addf %151, %161 : vector<32x256xf32>
    %163 = vector.shape_cast %162 : vector<32x256xf32> to vector<2x16x256xf32>
    %164 = vector.broadcast %72 : vector<1x16x1xf32> to vector<2x16x256xf32>
    %165 = arith.addf %163, %164 : vector<2x16x256xf32>
    %c0_42 = arith.constant 0 : index
    %c0_43 = arith.constant 0 : index
    %c0_44 = arith.constant 0 : index
    %166 = vector.load %arg6[%c0_42, %c0_43, %c0_44] : memref<1x16x1xf32, #tpu.memory_space<vmem>>, vector<1x16x1xf32>
    %c0_45 = arith.constant 0 : index
    %c0_46 = arith.constant 0 : index
    %c0_47 = arith.constant 0 : index
    %167 = vector.load %arg7[%c0_45, %c0_46, %c0_47] : memref<1x16x1xf32, #tpu.memory_space<vmem>>, vector<1x16x1xf32>
    %cst_48 = arith.constant dense<0.000000e+00> : vector<2x16xf32>
    %168 = vector.multi_reduction <add>, %165, %cst_48 [2] : vector<2x16x256xf32> to vector<2x16xf32>
    %169 = vector.shape_cast %168 : vector<2x16xf32> to vector<2x16x1xf32>
    %170 = vector.extract_strided_slice %169 {offsets = [0, 0, 0], sizes = [1, 16, 1], strides = [1, 1, 1]} : vector<2x16x1xf32> to vector<1x16x1xf32>
    %171 = vector.extract_strided_slice %169 {offsets = [1, 0, 0], sizes = [1, 16, 1], strides = [1, 1, 1]} : vector<2x16x1xf32> to vector<1x16x1xf32>
    %172 = arith.addf %170, %171 : vector<1x16x1xf32>
    %173 = arith.mulf %165, %165 : vector<2x16x256xf32>
    %cst_49 = arith.constant dense<0.000000e+00> : vector<2x16xf32>
    %174 = vector.multi_reduction <add>, %173, %cst_49 [2] : vector<2x16x256xf32> to vector<2x16xf32>
    %175 = vector.shape_cast %174 : vector<2x16xf32> to vector<2x16x1xf32>
    %176 = vector.extract_strided_slice %175 {offsets = [0, 0, 0], sizes = [1, 16, 1], strides = [1, 1, 1]} : vector<2x16x1xf32> to vector<1x16x1xf32>
    %177 = vector.extract_strided_slice %175 {offsets = [1, 0, 0], sizes = [1, 16, 1], strides = [1, 1, 1]} : vector<2x16x1xf32> to vector<1x16x1xf32>
    %178 = arith.addf %176, %177 : vector<1x16x1xf32>
    %cst_50 = arith.constant 0.001953125 : f32
    %179 = vector.broadcast %cst_50 : f32 to vector<1x16x1xf32>
    %180 = arith.mulf %172, %179 : vector<1x16x1xf32>
    %cst_51 = arith.constant 0.001953125 : f32
    %181 = vector.broadcast %cst_51 : f32 to vector<1x16x1xf32>
    %182 = arith.mulf %178, %181 : vector<1x16x1xf32>
    %183 = arith.mulf %180, %180 : vector<1x16x1xf32>
    %184 = arith.subf %182, %183 : vector<1x16x1xf32>
    %185 = vector.broadcast %180 : vector<1x16x1xf32> to vector<2x16x256xf32>
    %186 = arith.subf %165, %185 : vector<2x16x256xf32>
    %cst_52 = arith.constant 9.99999974E-6 : f32
    %187 = vector.broadcast %cst_52 : f32 to vector<1x16x1xf32>
    %188 = arith.addf %184, %187 : vector<1x16x1xf32>
    %189 = math.rsqrt %188 : vector<1x16x1xf32>
    %190 = vector.broadcast %189 : vector<1x16x1xf32> to vector<2x16x256xf32>
    %191 = arith.mulf %186, %190 : vector<2x16x256xf32>
    %192 = vector.broadcast %166 : vector<1x16x1xf32> to vector<2x16x256xf32>
    %193 = arith.mulf %191, %192 : vector<2x16x256xf32>
    %194 = vector.broadcast %167 : vector<1x16x1xf32> to vector<2x16x256xf32>
    %195 = arith.addf %193, %194 : vector<2x16x256xf32>
    %cst_53 = arith.constant 0.000000e+00 : f32
    %196 = vector.broadcast %cst_53 : f32 to vector<2x16x256xf32>
    %197 = arith.maximumf %195, %196 : vector<2x16x256xf32>
    %c0_54 = arith.constant 0 : index
    %c0_55 = arith.constant 0 : index
    %c0_56 = arith.constant 0 : index
    %198 = vector.load %arg8[%c0_54, %c0_55, %c0_56] : memref<16x4x1xf32, #tpu.memory_space<vmem>>, vector<16x4x1xf32>
    %cst_57 = arith.constant 0.000000e+00 : f32
    %199 = vector.broadcast %cst_57 : f32 to vector<2x4x256xf32>
    %200 = vector.extract_strided_slice %197 {offsets = [0, 0, 0], sizes = [2, 1, 256], strides = [1, 1, 1]} : vector<2x16x256xf32> to vector<2x1x256xf32>
    %201 = vector.extract_strided_slice %198 {offsets = [0, 0, 0], sizes = [1, 4, 1], strides = [1, 1, 1]} : vector<16x4x1xf32> to vector<1x4x1xf32>
    %202 = vector.broadcast %200 : vector<2x1x256xf32> to vector<2x4x256xf32>
    %203 = vector.broadcast %201 : vector<1x4x1xf32> to vector<2x4x256xf32>
    %204 = arith.mulf %202, %203 : vector<2x4x256xf32>
    %205 = arith.addf %199, %204 : vector<2x4x256xf32>
    %206 = vector.extract_strided_slice %197 {offsets = [0, 1, 0], sizes = [2, 1, 256], strides = [1, 1, 1]} : vector<2x16x256xf32> to vector<2x1x256xf32>
    %207 = vector.extract_strided_slice %198 {offsets = [1, 0, 0], sizes = [1, 4, 1], strides = [1, 1, 1]} : vector<16x4x1xf32> to vector<1x4x1xf32>
    %208 = vector.broadcast %206 : vector<2x1x256xf32> to vector<2x4x256xf32>
    %209 = vector.broadcast %207 : vector<1x4x1xf32> to vector<2x4x256xf32>
    %210 = arith.mulf %208, %209 : vector<2x4x256xf32>
    %211 = arith.addf %205, %210 : vector<2x4x256xf32>
    %212 = vector.extract_strided_slice %197 {offsets = [0, 2, 0], sizes = [2, 1, 256], strides = [1, 1, 1]} : vector<2x16x256xf32> to vector<2x1x256xf32>
    %213 = vector.extract_strided_slice %198 {offsets = [2, 0, 0], sizes = [1, 4, 1], strides = [1, 1, 1]} : vector<16x4x1xf32> to vector<1x4x1xf32>
    %214 = vector.broadcast %212 : vector<2x1x256xf32> to vector<2x4x256xf32>
    %215 = vector.broadcast %213 : vector<1x4x1xf32> to vector<2x4x256xf32>
    %216 = arith.mulf %214, %215 : vector<2x4x256xf32>
    %217 = arith.addf %211, %216 : vector<2x4x256xf32>
    %218 = vector.extract_strided_slice %197 {offsets = [0, 3, 0], sizes = [2, 1, 256], strides = [1, 1, 1]} : vector<2x16x256xf32> to vector<2x1x256xf32>
    %219 = vector.extract_strided_slice %198 {offsets = [3, 0, 0], sizes = [1, 4, 1], strides = [1, 1, 1]} : vector<16x4x1xf32> to vector<1x4x1xf32>
    %220 = vector.broadcast %218 : vector<2x1x256xf32> to vector<2x4x256xf32>
    %221 = vector.broadcast %219 : vector<1x4x1xf32> to vector<2x4x256xf32>
    %222 = arith.mulf %220, %221 : vector<2x4x256xf32>
    %223 = arith.addf %217, %222 : vector<2x4x256xf32>
    %224 = vector.extract_strided_slice %197 {offsets = [0, 4, 0], sizes = [2, 1, 256], strides = [1, 1, 1]} : vector<2x16x256xf32> to vector<2x1x256xf32>
    %225 = vector.extract_strided_slice %198 {offsets = [4, 0, 0], sizes = [1, 4, 1], strides = [1, 1, 1]} : vector<16x4x1xf32> to vector<1x4x1xf32>
    %226 = vector.broadcast %224 : vector<2x1x256xf32> to vector<2x4x256xf32>
    %227 = vector.broadcast %225 : vector<1x4x1xf32> to vector<2x4x256xf32>
    %228 = arith.mulf %226, %227 : vector<2x4x256xf32>
    %229 = arith.addf %223, %228 : vector<2x4x256xf32>
    %230 = vector.extract_strided_slice %197 {offsets = [0, 5, 0], sizes = [2, 1, 256], strides = [1, 1, 1]} : vector<2x16x256xf32> to vector<2x1x256xf32>
    %231 = vector.extract_strided_slice %198 {offsets = [5, 0, 0], sizes = [1, 4, 1], strides = [1, 1, 1]} : vector<16x4x1xf32> to vector<1x4x1xf32>
    %232 = vector.broadcast %230 : vector<2x1x256xf32> to vector<2x4x256xf32>
    %233 = vector.broadcast %231 : vector<1x4x1xf32> to vector<2x4x256xf32>
    %234 = arith.mulf %232, %233 : vector<2x4x256xf32>
    %235 = arith.addf %229, %234 : vector<2x4x256xf32>
    %236 = vector.extract_strided_slice %197 {offsets = [0, 6, 0], sizes = [2, 1, 256], strides = [1, 1, 1]} : vector<2x16x256xf32> to vector<2x1x256xf32>
    %237 = vector.extract_strided_slice %198 {offsets = [6, 0, 0], sizes = [1, 4, 1], strides = [1, 1, 1]} : vector<16x4x1xf32> to vector<1x4x1xf32>
    %238 = vector.broadcast %236 : vector<2x1x256xf32> to vector<2x4x256xf32>
    %239 = vector.broadcast %237 : vector<1x4x1xf32> to vector<2x4x256xf32>
    %240 = arith.mulf %238, %239 : vector<2x4x256xf32>
    %241 = arith.addf %235, %240 : vector<2x4x256xf32>
    %242 = vector.extract_strided_slice %197 {offsets = [0, 7, 0], sizes = [2, 1, 256], strides = [1, 1, 1]} : vector<2x16x256xf32> to vector<2x1x256xf32>
    %243 = vector.extract_strided_slice %198 {offsets = [7, 0, 0], sizes = [1, 4, 1], strides = [1, 1, 1]} : vector<16x4x1xf32> to vector<1x4x1xf32>
    %244 = vector.broadcast %242 : vector<2x1x256xf32> to vector<2x4x256xf32>
    %245 = vector.broadcast %243 : vector<1x4x1xf32> to vector<2x4x256xf32>
    %246 = arith.mulf %244, %245 : vector<2x4x256xf32>
    %247 = arith.addf %241, %246 : vector<2x4x256xf32>
    %248 = vector.extract_strided_slice %197 {offsets = [0, 8, 0], sizes = [2, 1, 256], strides = [1, 1, 1]} : vector<2x16x256xf32> to vector<2x1x256xf32>
    %249 = vector.extract_strided_slice %198 {offsets = [8, 0, 0], sizes = [1, 4, 1], strides = [1, 1, 1]} : vector<16x4x1xf32> to vector<1x4x1xf32>
    %250 = vector.broadcast %248 : vector<2x1x256xf32> to vector<2x4x256xf32>
    %251 = vector.broadcast %249 : vector<1x4x1xf32> to vector<2x4x256xf32>
    %252 = arith.mulf %250, %251 : vector<2x4x256xf32>
    %253 = arith.addf %247, %252 : vector<2x4x256xf32>
    %254 = vector.extract_strided_slice %197 {offsets = [0, 9, 0], sizes = [2, 1, 256], strides = [1, 1, 1]} : vector<2x16x256xf32> to vector<2x1x256xf32>
    %255 = vector.extract_strided_slice %198 {offsets = [9, 0, 0], sizes = [1, 4, 1], strides = [1, 1, 1]} : vector<16x4x1xf32> to vector<1x4x1xf32>
    %256 = vector.broadcast %254 : vector<2x1x256xf32> to vector<2x4x256xf32>
    %257 = vector.broadcast %255 : vector<1x4x1xf32> to vector<2x4x256xf32>
    %258 = arith.mulf %256, %257 : vector<2x4x256xf32>
    %259 = arith.addf %253, %258 : vector<2x4x256xf32>
    %260 = vector.extract_strided_slice %197 {offsets = [0, 10, 0], sizes = [2, 1, 256], strides = [1, 1, 1]} : vector<2x16x256xf32> to vector<2x1x256xf32>
    %261 = vector.extract_strided_slice %198 {offsets = [10, 0, 0], sizes = [1, 4, 1], strides = [1, 1, 1]} : vector<16x4x1xf32> to vector<1x4x1xf32>
    %262 = vector.broadcast %260 : vector<2x1x256xf32> to vector<2x4x256xf32>
    %263 = vector.broadcast %261 : vector<1x4x1xf32> to vector<2x4x256xf32>
    %264 = arith.mulf %262, %263 : vector<2x4x256xf32>
    %265 = arith.addf %259, %264 : vector<2x4x256xf32>
    %266 = vector.extract_strided_slice %197 {offsets = [0, 11, 0], sizes = [2, 1, 256], strides = [1, 1, 1]} : vector<2x16x256xf32> to vector<2x1x256xf32>
    %267 = vector.extract_strided_slice %198 {offsets = [11, 0, 0], sizes = [1, 4, 1], strides = [1, 1, 1]} : vector<16x4x1xf32> to vector<1x4x1xf32>
    %268 = vector.broadcast %266 : vector<2x1x256xf32> to vector<2x4x256xf32>
    %269 = vector.broadcast %267 : vector<1x4x1xf32> to vector<2x4x256xf32>
    %270 = arith.mulf %268, %269 : vector<2x4x256xf32>
    %271 = arith.addf %265, %270 : vector<2x4x256xf32>
    %272 = vector.extract_strided_slice %197 {offsets = [0, 12, 0], sizes = [2, 1, 256], strides = [1, 1, 1]} : vector<2x16x256xf32> to vector<2x1x256xf32>
    %273 = vector.extract_strided_slice %198 {offsets = [12, 0, 0], sizes = [1, 4, 1], strides = [1, 1, 1]} : vector<16x4x1xf32> to vector<1x4x1xf32>
    %274 = vector.broadcast %272 : vector<2x1x256xf32> to vector<2x4x256xf32>
    %275 = vector.broadcast %273 : vector<1x4x1xf32> to vector<2x4x256xf32>
    %276 = arith.mulf %274, %275 : vector<2x4x256xf32>
    %277 = arith.addf %271, %276 : vector<2x4x256xf32>
    %278 = vector.extract_strided_slice %197 {offsets = [0, 13, 0], sizes = [2, 1, 256], strides = [1, 1, 1]} : vector<2x16x256xf32> to vector<2x1x256xf32>
    %279 = vector.extract_strided_slice %198 {offsets = [13, 0, 0], sizes = [1, 4, 1], strides = [1, 1, 1]} : vector<16x4x1xf32> to vector<1x4x1xf32>
    %280 = vector.broadcast %278 : vector<2x1x256xf32> to vector<2x4x256xf32>
    %281 = vector.broadcast %279 : vector<1x4x1xf32> to vector<2x4x256xf32>
    %282 = arith.mulf %280, %281 : vector<2x4x256xf32>
    %283 = arith.addf %277, %282 : vector<2x4x256xf32>
    %284 = vector.extract_strided_slice %197 {offsets = [0, 14, 0], sizes = [2, 1, 256], strides = [1, 1, 1]} : vector<2x16x256xf32> to vector<2x1x256xf32>
    %285 = vector.extract_strided_slice %198 {offsets = [14, 0, 0], sizes = [1, 4, 1], strides = [1, 1, 1]} : vector<16x4x1xf32> to vector<1x4x1xf32>
    %286 = vector.broadcast %284 : vector<2x1x256xf32> to vector<2x4x256xf32>
    %287 = vector.broadcast %285 : vector<1x4x1xf32> to vector<2x4x256xf32>
    %288 = arith.mulf %286, %287 : vector<2x4x256xf32>
    %289 = arith.addf %283, %288 : vector<2x4x256xf32>
    %290 = vector.extract_strided_slice %197 {offsets = [0, 15, 0], sizes = [2, 1, 256], strides = [1, 1, 1]} : vector<2x16x256xf32> to vector<2x1x256xf32>
    %291 = vector.extract_strided_slice %198 {offsets = [15, 0, 0], sizes = [1, 4, 1], strides = [1, 1, 1]} : vector<16x4x1xf32> to vector<1x4x1xf32>
    %292 = vector.broadcast %290 : vector<2x1x256xf32> to vector<2x4x256xf32>
    %293 = vector.broadcast %291 : vector<1x4x1xf32> to vector<2x4x256xf32>
    %294 = arith.mulf %292, %293 : vector<2x4x256xf32>
    %295 = arith.addf %289, %294 : vector<2x4x256xf32>
    %c0_58 = arith.constant 0 : index
    %c0_59 = arith.constant 0 : index
    %c0_60 = arith.constant 0 : index
    %296 = vector.load %arg9[%c0_58, %c0_59, %c0_60] : memref<1x4x1xf32, #tpu.memory_space<vmem>>, vector<1x4x1xf32>
    %c0_61 = arith.constant 0 : index
    %c0_62 = arith.constant 0 : index
    %c0_63 = arith.constant 0 : index
    %297 = vector.load %arg10[%c0_61, %c0_62, %c0_63] : memref<1x4x1xf32, #tpu.memory_space<vmem>>, vector<1x4x1xf32>
    %cst_64 = arith.constant dense<0.000000e+00> : vector<2x4xf32>
    %298 = vector.multi_reduction <add>, %295, %cst_64 [2] : vector<2x4x256xf32> to vector<2x4xf32>
    %299 = vector.shape_cast %298 : vector<2x4xf32> to vector<2x4x1xf32>
    %300 = vector.extract_strided_slice %299 {offsets = [0, 0, 0], sizes = [1, 4, 1], strides = [1, 1, 1]} : vector<2x4x1xf32> to vector<1x4x1xf32>
    %301 = vector.extract_strided_slice %299 {offsets = [1, 0, 0], sizes = [1, 4, 1], strides = [1, 1, 1]} : vector<2x4x1xf32> to vector<1x4x1xf32>
    %302 = arith.addf %300, %301 : vector<1x4x1xf32>
    %303 = arith.mulf %295, %295 : vector<2x4x256xf32>
    %cst_65 = arith.constant dense<0.000000e+00> : vector<2x4xf32>
    %304 = vector.multi_reduction <add>, %303, %cst_65 [2] : vector<2x4x256xf32> to vector<2x4xf32>
    %305 = vector.shape_cast %304 : vector<2x4xf32> to vector<2x4x1xf32>
    %306 = vector.extract_strided_slice %305 {offsets = [0, 0, 0], sizes = [1, 4, 1], strides = [1, 1, 1]} : vector<2x4x1xf32> to vector<1x4x1xf32>
    %307 = vector.extract_strided_slice %305 {offsets = [1, 0, 0], sizes = [1, 4, 1], strides = [1, 1, 1]} : vector<2x4x1xf32> to vector<1x4x1xf32>
    %308 = arith.addf %306, %307 : vector<1x4x1xf32>
    %cst_66 = arith.constant 0.001953125 : f32
    %309 = vector.broadcast %cst_66 : f32 to vector<1x4x1xf32>
    %310 = arith.mulf %302, %309 : vector<1x4x1xf32>
    %cst_67 = arith.constant 0.001953125 : f32
    %311 = vector.broadcast %cst_67 : f32 to vector<1x4x1xf32>
    %312 = arith.mulf %308, %311 : vector<1x4x1xf32>
    %313 = arith.mulf %310, %310 : vector<1x4x1xf32>
    %314 = arith.subf %312, %313 : vector<1x4x1xf32>
    %315 = vector.broadcast %310 : vector<1x4x1xf32> to vector<2x4x256xf32>
    %316 = arith.subf %295, %315 : vector<2x4x256xf32>
    %cst_68 = arith.constant 9.99999974E-6 : f32
    %317 = vector.broadcast %cst_68 : f32 to vector<1x4x1xf32>
    %318 = arith.addf %314, %317 : vector<1x4x1xf32>
    %319 = math.rsqrt %318 : vector<1x4x1xf32>
    %320 = vector.broadcast %319 : vector<1x4x1xf32> to vector<2x4x256xf32>
    %321 = arith.mulf %316, %320 : vector<2x4x256xf32>
    %322 = vector.broadcast %296 : vector<1x4x1xf32> to vector<2x4x256xf32>
    %323 = arith.mulf %321, %322 : vector<2x4x256xf32>
    %324 = vector.broadcast %297 : vector<1x4x1xf32> to vector<2x4x256xf32>
    %325 = arith.addf %323, %324 : vector<2x4x256xf32>
    %c0_69 = arith.constant 0 : index
    %c0_70 = arith.constant 0 : index
    %c0_71 = arith.constant 0 : index
    %326 = vector.load %arg0[%c0_69, %c0_70, %c0_71] : memref<2x4x256xf32, #tpu.memory_space<vmem>>, vector<2x4x256xf32>
    %327 = arith.addf %325, %326 : vector<2x4x256xf32>
    %328 = vector.shape_cast %327 : vector<2x4x256xf32> to vector<8x256xf32>
    %c0_72 = arith.constant 0 : index
    %c0_73 = arith.constant 0 : index
    %329 = vector.load %arg11[%c0_72, %c0_73] : memref<8x256xf32, #tpu.memory_space<vmem>>, vector<8x256xf32>
    tpu.vector_store %arg11[%c0_72, %c0_73], %328 {strides = array<i32>} : memref<8x256xf32, #tpu.memory_space<vmem>>, vector<8x256xf32>,
    return
  }
}

</mosaic_0001>

<llo_original>
// kernel: inverted_residual.1
$region0: #{inverted_residual.1}
  #allocation0 [shape = 'u32[]', space=smem, size = 0x4, offset = 0x4, fixed_abs, tag = 'smem constant byte address 0x4 - core index']
  #allocation1 [shape = 'u32[144,128]{1,0:T(1,128)}', space=vmem, size = 0x12000, scoped, tag = 'internal scratch']
  %s0 = inlined_call_operand.vmem [shape: f32[2,4,256], index: 0, kind: input, shape index: {}]
  %s1 = inlined_call_operand.vmem [shape: f32[4,16,1], index: 1, kind: input, shape index: {}]
  %s2 = inlined_call_operand.vmem [shape: f32[1,16,1], index: 2, kind: input, shape index: {}]
  %s3 = inlined_call_operand.vmem [shape: f32[1,16,1], index: 3, kind: input, shape index: {}]
  %s4 = inlined_call_operand.vmem [shape: f32[9,16,1], index: 4, kind: input, shape index: {}]
  %s5 = inlined_call_operand.vmem [shape: f32[1,16,1], index: 5, kind: input, shape index: {}]
  %s6 = inlined_call_operand.vmem [shape: f32[1,16,1], index: 6, kind: input, shape index: {}]
  %s7 = inlined_call_operand.vmem [shape: f32[1,16,1], index: 7, kind: input, shape index: {}]
  %s8 = inlined_call_operand.vmem [shape: f32[16,4,1], index: 8, kind: input, shape index: {}]
  %s9 = inlined_call_operand.vmem [shape: f32[1,4,1], index: 9, kind: input, shape index: {}]
  %s10 = inlined_call_operand.vmem [shape: f32[1,4,1], index: 10, kind: input, shape index: {}]
  %s11 = inlined_call_operand.vmem [shape: f32[8,256], index: 11, kind: output, shape index: {}]
  %s12 = sld [smem:[#allocation0]]
  $region54: #{inverted_residual.1} parent=0
    _
  %s14 = ssub.s32 1, %s12
  %s15 = scalar_select 0, %s14, %s12
  // Predicated region
  $region2: #{inverted_residual.1} parent=0 // pred_check
    _
  $region3: #{inverted_residual.1} parent=0 // pred_check_branch
    %17 = sbr.rel (0) target = $region5
  $region4: #{inverted_residual.1} parent=0 // pred_region
    _
  $region5: #{inverted_residual.1} parent=0 // pred_fallthru
    _
  // Predicated region
  $region6: #{inverted_residual.1} parent=0 // pred_check
    _
  $region7: #{inverted_residual.1} parent=0 // pred_check_branch
    %19 = sbr.rel (0) target = $region9
  $region8: #{inverted_residual.1} parent=0 // pred_region
    _
  $region9: #{inverted_residual.1} parent=0 // pred_fallthru
    _
  // Predicated region
  $region10: #{inverted_residual.1} parent=0 // pred_check
    _
  $region11: #{inverted_residual.1} parent=0 // pred_check_branch
    %21 = sbr.rel (0) target = $region13
  $region12: #{inverted_residual.1} parent=0 // pred_region
    _
  $region13: #{inverted_residual.1} parent=0 // pred_fallthru
    _
  // Predicated region
  $region14: #{inverted_residual.1} parent=0 // pred_check
    _
  $region15: #{inverted_residual.1} parent=0 // pred_check_branch
    %23 = sbr.rel (0) target = $region17
  $region16: #{inverted_residual.1} parent=0 // pred_region
    _
  $region17: #{inverted_residual.1} parent=0 // pred_fallthru
    _
  // Predicated region
  $region18: #{inverted_residual.1} parent=0 // pred_check
    _
  $region19: #{inverted_residual.1} parent=0 // pred_check_branch
    %25 = sbr.rel (0) target = $region21
  $region20: #{inverted_residual.1} parent=0 // pred_region
    _
  $region21: #{inverted_residual.1} parent=0 // pred_fallthru
    _
  // Predicated region
  $region22: #{inverted_residual.1} parent=0 // pred_check
    _
  $region23: #{inverted_residual.1} parent=0 // pred_check_branch
    %27 = sbr.rel (0) target = $region25
  $region24: #{inverted_residual.1} parent=0 // pred_region
    _
  $region25: #{inverted_residual.1} parent=0 // pred_fallthru
    _
  // Predicated region
  $region26: #{inverted_residual.1} parent=0 // pred_check
    _
  $region27: #{inverted_residual.1} parent=0 // pred_check_branch
    %29 = sbr.rel (0) target = $region29
  $region28: #{inverted_residual.1} parent=0 // pred_region
    _
  $region29: #{inverted_residual.1} parent=0 // pred_fallthru
    _
  // Predicated region
  $region30: #{inverted_residual.1} parent=0 // pred_check
    _
  $region31: #{inverted_residual.1} parent=0 // pred_check_branch
    %31 = sbr.rel (0) target = $region33
  $region32: #{inverted_residual.1} parent=0 // pred_region
    _
  $region33: #{inverted_residual.1} parent=0 // pred_fallthru
    _
  // Predicated region
  $region34: #{inverted_residual.1} parent=0 // pred_check
    _
  $region35: #{inverted_residual.1} parent=0 // pred_check_branch
    %33 = sbr.rel (0) target = $region37
  $region36: #{inverted_residual.1} parent=0 // pred_region
    _
  $region37: #{inverted_residual.1} parent=0 // pred_fallthru
    _
  // Predicated region
  $region38: #{inverted_residual.1} parent=0 // pred_check
    _
  $region39: #{inverted_residual.1} parent=0 // pred_check_branch
    %35 = sbr.rel (0) target = $region41
  $region40: #{inverted_residual.1} parent=0 // pred_region
    _
  $region41: #{inverted_residual.1} parent=0 // pred_fallthru
    _
  // Predicated region
  $region42: #{inverted_residual.1} parent=0 // pred_check
    _
  $region43: #{inverted_residual.1} parent=0 // pred_check_branch
    %37 = sbr.rel (0) target = $region45
  $region44: #{inverted_residual.1} parent=0 // pred_region
    _
  $region45: #{inverted_residual.1} parent=0 // pred_fallthru
    _
  %v38 = vld [vmem:[%s1] sm:$0xff]
  %v39 = vld [vmem:[%s1 + $0x8] sm:$0xff]
  %v40 = vld [vmem:[%s1 + $0x10] sm:$0xff]
  %v41 = vld [vmem:[%s1 + $0x18] sm:$0xff]
  %v42 = vld [vmem:[%s1 + $0x20] sm:$0xff]
  %v43 = vld [vmem:[%s1 + $0x28] sm:$0xff]
  %v44 = vld [vmem:[%s1 + $0x30] sm:$0xff]
  %v45 = vld [vmem:[%s1 + $0x38] sm:$0xff]
  %v46 = vld [vmem:[%s0] ss:$4 sm:$0x3]
  %s47 = scalar_lea.vmem %s0, 8
  %v48 = vld [vmem:[%s47] ss:$4 sm:$0x3]
  %v51 = vlaneseq
  %v52 = vshrl.u32 %v51, 7
  %v53 = vsub.s32 0, %v52
  %v54 = vrot.slane %v46, %v53
  %v55 = vlaneseq
  %v56 = vshrl.u32 %v55, 7
  %v57 = vsub.s32 1, %v56
  %v58 = vrot.slane %v46, %v57
  %v59 = vlaneseq
  %v60 = vshrl.u32 %v59, 7
  %v61 = vsub.s32 0, %v60
  %v62 = vrot.slane %v48, %v61
  %v63 = vlaneseq
  %v64 = vshrl.u32 %v63, 7
  %v65 = vsub.s32 1, %v64
  %v66 = vrot.slane %v48, %v65
  %72 = vset.pattern.permute.xlu0 0
  %73 = vperm.xlu0 %72, %v38
  %v74 = vpop.permute.xlu0 %73
  %77 = vset.pattern.permute.xlu0 0
  %78 = vperm.xlu0 %77, %v39
  %v79 = vpop.permute.xlu0 %78
  %v81 = vmul.f32 %v54, %v74
  %v82 = vmul.f32 %v58, %v74
  %v83 = vmul.f32 %v54, %v79
  %v84 = vmul.f32 %v58, %v79
  %v85 = vmul.f32 %v62, %v74
  %v86 = vmul.f32 %v66, %v74
  %v87 = vmul.f32 %v62, %v79
  %v88 = vmul.f32 %v66, %v79
  %v89 = vadd.f32 %v81, 0.0
  %v90 = vadd.f32 %v82, 0.0
  %v91 = vadd.f32 %v83, 0.0
  %v92 = vadd.f32 %v84, 0.0
  %v93 = vadd.f32 %v85, 0.0
  %v94 = vadd.f32 %v86, 0.0
  %v95 = vadd.f32 %v87, 0.0
  %v96 = vadd.f32 %v88, 0.0
  %s97 = scalar_lea.vmem %s0, 1
  %v98 = vld [vmem:[%s97] ss:$4 sm:$0x3]
  %s99 = scalar_lea.vmem %s0, 9
  %v100 = vld [vmem:[%s99] ss:$4 sm:$0x3]
  %v103 = vlaneseq
  %v104 = vshrl.u32 %v103, 7
  %v105 = vsub.s32 0, %v104
  %v106 = vrot.slane %v98, %v105
  %v107 = vlaneseq
  %v108 = vshrl.u32 %v107, 7
  %v109 = vsub.s32 1, %v108
  %v110 = vrot.slane %v98, %v109
  %v111 = vlaneseq
  %v112 = vshrl.u32 %v111, 7
  %v113 = vsub.s32 0, %v112
  %v114 = vrot.slane %v100, %v113
  %v115 = vlaneseq
  %v116 = vshrl.u32 %v115, 7
  %v117 = vsub.s32 1, %v116
  %v118 = vrot.slane %v100, %v117
  %124 = vset.pattern.permute.xlu0 0
  %125 = vperm.xlu0 %124, %v40
  %v126 = vpop.permute.xlu0 %125
  %129 = vset.pattern.permute.xlu0 0
  %130 = vperm.xlu0 %129, %v41
  %v131 = vpop.permute.xlu0 %130
  %v133 = vmul.f32 %v106, %v126
  %v134 = vmul.f32 %v110, %v126
  %v135 = vmul.f32 %v106, %v131
  %v136 = vmul.f32 %v110, %v131
  %v137 = vmul.f32 %v114, %v126
  %v138 = vmul.f32 %v118, %v126
  %v139 = vmul.f32 %v114, %v131
  %v140 = vmul.f32 %v118, %v131
  %v141 = vadd.f32 %v89, %v133
  %v142 = vadd.f32 %v90, %v134
  %v143 = vadd.f32 %v91, %v135
  %v144 = vadd.f32 %v92, %v136
  %v145 = vadd.f32 %v93, %v137
  %v146 = vadd.f32 %v94, %v138
  %v147 = vadd.f32 %v95, %v139
  %v148 = vadd.f32 %v96, %v140
  %s149 = scalar_lea.vmem %s0, 2
  %v150 = vld [vmem:[%s149] ss:$4 sm:$0x3]
  %s151 = scalar_lea.vmem %s0, 10
  %v152 = vld [vmem:[%s151] ss:$4 sm:$0x3]
  %v155 = vlaneseq
  %v156 = vshrl.u32 %v155, 7
  %v157 = vsub.s32 0, %v156
  %v158 = vrot.slane %v150, %v157
  %v159 = vlaneseq
  %v160 = vshrl.u32 %v159, 7
  %v161 = vsub.s32 1, %v160
  %v162 = vrot.slane %v150, %v161
  %v163 = vlaneseq
  %v164 = vshrl.u32 %v163, 7
  %v165 = vsub.s32 0, %v164
  %v166 = vrot.slane %v152, %v165
  %v167 = vlaneseq
  %v168 = vshrl.u32 %v167, 7
  %v169 = vsub.s32 1, %v168
  %v170 = vrot.slane %v152, %v169
  %176 = vset.pattern.permute.xlu0 0
  %177 = vperm.xlu0 %176, %v42
  %v178 = vpop.permute.xlu0 %177
  %181 = vset.pattern.permute.xlu0 0
  %182 = vperm.xlu0 %181, %v43
  %v183 = vpop.permute.xlu0 %182
  %v185 = vmul.f32 %v158, %v178
  %v186 = vmul.f32 %v162, %v178
  %v187 = vmul.f32 %v158, %v183
  %v188 = vmul.f32 %v162, %v183
  %v189 = vmul.f32 %v166, %v178
  %v190 = vmul.f32 %v170, %v178
  %v191 = vmul.f32 %v166, %v183
  %v192 = vmul.f32 %v170, %v183
  %v193 = vadd.f32 %v141, %v185
  %v194 = vadd.f32 %v142, %v186
  %v195 = vadd.f32 %v143, %v187
  %v196 = vadd.f32 %v144, %v188
  %v197 = vadd.f32 %v145, %v189
  %v198 = vadd.f32 %v146, %v190
  %v199 = vadd.f32 %v147, %v191
  %v200 = vadd.f32 %v148, %v192
  %s201 = scalar_lea.vmem %s0, 3
  %v202 = vld [vmem:[%s201] ss:$4 sm:$0x3]
  %s203 = scalar_lea.vmem %s0, 11
  %v204 = vld [vmem:[%s203] ss:$4 sm:$0x3]
  %v207 = vlaneseq
  %v208 = vshrl.u32 %v207, 7
  %v209 = vsub.s32 0, %v208
  %v210 = vrot.slane %v202, %v209
  %v211 = vlaneseq
  %v212 = vshrl.u32 %v211, 7
  %v213 = vsub.s32 1, %v212
  %v214 = vrot.slane %v202, %v213
  %v215 = vlaneseq
  %v216 = vshrl.u32 %v215, 7
  %v217 = vsub.s32 0, %v216
  %v218 = vrot.slane %v204, %v217
  %v219 = vlaneseq
  %v220 = vshrl.u32 %v219, 7
  %v221 = vsub.s32 1, %v220
  %v222 = vrot.slane %v204, %v221
  %228 = vset.pattern.permute.xlu0 0
  %229 = vperm.xlu0 %228, %v44
  %v230 = vpop.permute.xlu0 %229
  %233 = vset.pattern.permute.xlu0 0
  %234 = vperm.xlu0 %233, %v45
  %v235 = vpop.permute.xlu0 %234
  %v237 = vmul.f32 %v210, %v230
  %v238 = vmul.f32 %v214, %v230
  %v239 = vmul.f32 %v210, %v235
  %v240 = vmul.f32 %v214, %v235
  %v241 = vmul.f32 %v218, %v230
  %v242 = vmul.f32 %v222, %v230
  %v243 = vmul.f32 %v218, %v235
  %v244 = vmul.f32 %v222, %v235
  %v245 = vadd.f32 %v193, %v237
  %v246 = vadd.f32 %v194, %v238
  %v247 = vadd.f32 %v195, %v239
  %v248 = vadd.f32 %v196, %v240
  %v249 = vadd.f32 %v197, %v241
  %v250 = vadd.f32 %v198, %v242
  %v251 = vadd.f32 %v199, %v243
  %v252 = vadd.f32 %v200, %v244
  %v253 = vld [vmem:[%s2] sm:$0xff]
  %v254 = vld [vmem:[%s2 + $0x8] sm:$0xff]
  %v255 = vld [vmem:[%s3] sm:$0xff]
  %v256 = vld [vmem:[%s3 + $0x8] sm:$0xff]
  %v257 = vadd.f32 %v245, %v246
  %258 = vadd.xlane.f32.xlu0 %v257
  %v259 = vpop.xlane.xlu0 %258
  %v260 = vadd.f32 %v247, %v248
  %261 = vadd.xlane.f32.xlu0 %v260
  %v262 = vpop.xlane.xlu0 %261
  %v263 = vadd.f32 %v249, %v250
  %264 = vadd.xlane.f32.xlu0 %v263
  %v265 = vpop.xlane.xlu0 %264
  %v266 = vadd.f32 %v251, %v252
  %267 = vadd.xlane.f32.xlu0 %v266
  %v268 = vpop.xlane.xlu0 %267
  %v269 = vadd.f32 %v259, %v265
  %v270 = vadd.f32 %v262, %v268
  %v271 = vmul.f32 %v245, %v245
  %v272 = vmul.f32 %v246, %v246
  %v273 = vmul.f32 %v247, %v247
  %v274 = vmul.f32 %v248, %v248
  %v275 = vmul.f32 %v249, %v249
  %v276 = vmul.f32 %v250, %v250
  %v277 = vmul.f32 %v251, %v251
  %v278 = vmul.f32 %v252, %v252
  %v279 = vadd.f32 %v271, %v272
  %280 = vadd.xlane.f32.xlu0 %v279
  %v281 = vpop.xlane.xlu0 %280
  %v282 = vadd.f32 %v273, %v274
  %283 = vadd.xlane.f32.xlu0 %v282
  %v284 = vpop.xlane.xlu0 %283
  %v285 = vadd.f32 %v275, %v276
  %286 = vadd.xlane.f32.xlu0 %v285
  %v287 = vpop.xlane.xlu0 %286
  %v288 = vadd.f32 %v277, %v278
  %289 = vadd.xlane.f32.xlu0 %v288
  %v290 = vpop.xlane.xlu0 %289
  %v291 = vadd.f32 %v281, %v287
  %v292 = vadd.f32 %v284, %v290
  %v293 = vmul.f32 %v269, 0.001953125
  %v294 = vmul.f32 %v270, 0.001953125
  %v295 = vmul.f32 %v291, 0.001953125
  %v296 = vmul.f32 %v292, 0.001953125
  %v297 = vmul.f32 %v293, %v293
  %v298 = vmul.f32 %v294, %v294
  %v299 = vsub.f32 %v295, %v297
  %v300 = vsub.f32 %v296, %v298
  %v301 = vsub.f32 %v245, %v293
  %v302 = vsub.f32 %v246, %v293
  %v303 = vsub.f32 %v247, %v294
  %v304 = vsub.f32 %v248, %v294
  %v305 = vsub.f32 %v249, %v293
  %v306 = vsub.f32 %v250, %v293
  %v307 = vsub.f32 %v251, %v294
  %v308 = vsub.f32 %v252, %v294
  %v309 = vadd.f32 %v299, 1e-05
  %v310 = vadd.f32 %v300, 1e-05
  %v311 = vrsqrt.pop %v309
  %v312 = vrsqrt.pop %v310
  %v313 = vmul.f32 %v301, %v311
  %v314 = vmul.f32 %v302, %v311
  %v315 = vmul.f32 %v303, %v312
  %v316 = vmul.f32 %v304, %v312
  %v317 = vmul.f32 %v305, %v311
  %v318 = vmul.f32 %v306, %v311
  %v319 = vmul.f32 %v307, %v312
  %v320 = vmul.f32 %v308, %v312
  %322 = vset.pattern.permute.xlu0 0
  %323 = vperm.xlu0 %322, %v253
  %v324 = vpop.permute.xlu0 %323
  %327 = vset.pattern.permute.xlu0 0
  %328 = vperm.xlu0 %327, %v254
  %v329 = vpop.permute.xlu0 %328
  %v331 = vmul.f32 %v313, %v324
  %v332 = vmul.f32 %v314, %v324
  %v333 = vmul.f32 %v315, %v329
  %v334 = vmul.f32 %v316, %v329
  %v335 = vmul.f32 %v317, %v324
  %v336 = vmul.f32 %v318, %v324
  %v337 = vmul.f32 %v319, %v329
  %v338 = vmul.f32 %v320, %v329
  %340 = vset.pattern.permute.xlu0 0
  %341 = vperm.xlu0 %340, %v255
  %v342 = vpop.permute.xlu0 %341
  %345 = vset.pattern.permute.xlu0 0
  %346 = vperm.xlu0 %345, %v256
  %v347 = vpop.permute.xlu0 %346
  %v349 = vadd.f32 %v331, %v342
  %v350 = vadd.f32 %v332, %v342
  %v351 = vadd.f32 %v333, %v347
  %v352 = vadd.f32 %v334, %v347
  %v353 = vadd.f32 %v335, %v342
  %v354 = vadd.f32 %v336, %v342
  %v355 = vadd.f32 %v337, %v347
  %v356 = vadd.f32 %v338, %v347
  %v357 = vmax.f32 %v349, 0.0
  %v358 = vmax.f32 %v350, 0.0
  %v359 = vmax.f32 %v351, 0.0
  %v360 = vmax.f32 %v352, 0.0
  %v361 = vmax.f32 %v353, 0.0
  %v362 = vmax.f32 %v354, 0.0
  %v363 = vmax.f32 %v355, 0.0
  %v364 = vmax.f32 %v356, 0.0
  %v365 = vlaneseq
  %v366 = vand.u32 %v365, 127
  %v367 = vadd.s32 %v366, 128
  %v368 = vand.u32 %v366, 15
  %v369 = vand.u32 %v367, 15
  %vm370 = vcmp.ge.s32.totalorder %v368, 1
  %vm371 = vcmp.ge.s32.totalorder %v369, 1
  %vm372 = vcmp.le.s32.totalorder %v368, 14
  %vm373 = vcmp.le.s32.totalorder %v369, 14
  %vm374 = vcmp.ge.s32.totalorder %v366, 16
  %vm375 = vcmp.ge.s32.totalorder %v367, 16
  %vm376 = vcmp.lt.s32.totalorder %v366, 240
  %vm377 = vcmp.lt.s32.totalorder %v367, 240
  %v378 = vld [vmem:[%s4] sm:$0xff]
  %v379 = vld [vmem:[%s4 + $0x8] sm:$0xff]
  %v380 = vld [vmem:[%s4 + $0x10] sm:$0xff]
  %v381 = vld [vmem:[%s4 + $0x18] sm:$0xff]
  %v382 = vld [vmem:[%s4 + $0x20] sm:$0xff]
  %v383 = vld [vmem:[%s4 + $0x28] sm:$0xff]
  %v384 = vld [vmem:[%s4 + $0x30] sm:$0xff]
  %v385 = vld [vmem:[%s4 + $0x38] sm:$0xff]
  %v386 = vld [vmem:[%s4 + $0x40] sm:$0xff]
  %v387 = vld [vmem:[%s4 + $0x48] sm:$0xff]
  %v388 = vld [vmem:[%s4 + $0x50] sm:$0xff]
  %v389 = vld [vmem:[%s4 + $0x58] sm:$0xff]
  %v390 = vld [vmem:[%s4 + $0x60] sm:$0xff]
  %v391 = vld [vmem:[%s4 + $0x68] sm:$0xff]
  %v392 = vld [vmem:[%s4 + $0x70] sm:$0xff]
  %v393 = vld [vmem:[%s4 + $0x78] sm:$0xff]
  %v394 = vld [vmem:[%s4 + $0x80] sm:$0xff]
  %v395 = vld [vmem:[%s4 + $0x88] sm:$0xff]
  %v396 = vld [vmem:[%s5] sm:$0xff]
  %v397 = vld [vmem:[%s5 + $0x8] sm:$0xff]
  %398 = vrot.lane.b32.xlu0 %v357, 17
  %v399 = vpop.permute.xlu0 %398
  %400 = vrot.lane.b32.xlu0 %v359, 17
  %v401 = vpop.permute.xlu0 %400
  %402 = vrot.lane.b32.xlu0 %v361, 17
  %v403 = vpop.permute.xlu0 %402
  %404 = vrot.lane.b32.xlu0 %v363, 17
  %v405 = vpop.permute.xlu0 %404
  %406 = vrot.lane.b32.xlu0 %v358, 17
  %v407 = vpop.permute.xlu0 %406
  %408 = vrot.lane.b32.xlu0 %v360, 17
  %v409 = vpop.permute.xlu0 %408
  %410 = vrot.lane.b32.xlu0 %v362, 17
  %v411 = vpop.permute.xlu0 %410
  %412 = vrot.lane.b32.xlu0 %v364, 17
  %v413 = vpop.permute.xlu0 %412
  %vm414 = vcmp.lt.s32.totalorder %v366, 17
  %v415 = vsel %vm414, %v399, %v407
  %v416 = vsel %vm414, %v401, %v409
  %v417 = vsel %vm414, %v403, %v411
  %v418 = vsel %vm414, %v405, %v413
  %v419 = vsel %vm414, %v407, %v399
  %v420 = vsel %vm414, %v409, %v401
  %v421 = vsel %vm414, %v411, %v403
  %v422 = vsel %vm414, %v413, %v405
  %vm423 = vmand %vm374, %vm370
  %vm424 = vmand %vm375, %vm371
  %v425 = vsel %vm423, 1, 0
  %v426 = vsel %vm424, 1, 0
  %vm427 = vcmp.eq.s32.totalorder %v425, 1
  %vm428 = vcmp.eq.s32.totalorder %v426, 1
  %v429 = vsel %vm427, %v419, 0.0
  %v430 = vsel %vm428, %v415, 0.0
  %v431 = vsel %vm427, %v420, 0.0
  %v432 = vsel %vm428, %v416, 0.0
  %v433 = vsel %vm427, %v421, 0.0
  %v434 = vsel %vm428, %v417, 0.0
  %v435 = vsel %vm427, %v422, 0.0
  %v436 = vsel %vm428, %v418, 0.0
  %438 = vset.pattern.permute.xlu0 0
  %439 = vperm.xlu0 %438, %v378
  %v440 = vpop.permute.xlu0 %439
  %443 = vset.pattern.permute.xlu0 0
  %444 = vperm.xlu0 %443, %v379
  %v445 = vpop.permute.xlu0 %444
  %v447 = vmul.f32 %v429, %v440
  %v448 = vmul.f32 %v430, %v440
  %v449 = vmul.f32 %v431, %v445
  %v450 = vmul.f32 %v432, %v445
  %v451 = vmul.f32 %v433, %v440
  %v452 = vmul.f32 %v434, %v440
  %v453 = vmul.f32 %v435, %v445
  %v454 = vmul.f32 %v436, %v445
  %v455 = vadd.f32 %v447, 0.0
  %v456 = vadd.f32 %v448, 0.0
  %v457 = vadd.f32 %v449, 0.0
  %v458 = vadd.f32 %v450, 0.0
  %v459 = vadd.f32 %v451, 0.0
  %v460 = vadd.f32 %v452, 0.0
  %v461 = vadd.f32 %v453, 0.0
  %v462 = vadd.f32 %v454, 0.0
  %463 = vrot.lane.b32.xlu0 %v357, 16
  %v464 = vpop.permute.xlu0 %463
  %465 = vrot.lane.b32.xlu0 %v359, 16
  %v466 = vpop.permute.xlu0 %465
  %467 = vrot.lane.b32.xlu0 %v361, 16
  %v468 = vpop.permute.xlu0 %467
  %469 = vrot.lane.b32.xlu0 %v363, 16
  %v470 = vpop.permute.xlu0 %469
  %471 = vrot.lane.b32.xlu0 %v358, 16
  %v472 = vpop.permute.xlu0 %471
  %473 = vrot.lane.b32.xlu0 %v360, 16
  %v474 = vpop.permute.xlu0 %473
  %475 = vrot.lane.b32.xlu0 %v362, 16
  %v476 = vpop.permute.xlu0 %475
  %477 = vrot.lane.b32.xlu0 %v364, 16
  %v478 = vpop.permute.xlu0 %477
  %vm479 = vcmp.lt.s32.totalorder %v366, 16
  %v480 = vsel %vm479, %v464, %v472
  %v481 = vsel %vm479, %v466, %v474
  %v482 = vsel %vm479, %v468, %v476
  %v483 = vsel %vm479, %v470, %v478
  %v484 = vsel %vm479, %v472, %v464
  %v485 = vsel %vm479, %v474, %v466
  %v486 = vsel %vm479, %v476, %v468
  %v487 = vsel %vm479, %v478, %v470
  %v488 = vsel %vm374, 1, 0
  %v489 = vsel %vm375, 1, 0
  %vm490 = vcmp.eq.s32.totalorder %v488, 1
  %vm491 = vcmp.eq.s32.totalorder %v489, 1
  %v492 = vsel %vm490, %v484, 0.0
  %v493 = vsel %vm491, %v480, 0.0
  %v494 = vsel %vm490, %v485, 0.0
  %v495 = vsel %vm491, %v481, 0.0
  %v496 = vsel %vm490, %v486, 0.0
  %v497 = vsel %vm491, %v482, 0.0
  %v498 = vsel %vm490, %v487, 0.0
  %v499 = vsel %vm491, %v483, 0.0
  %501 = vset.pattern.permute.xlu0 0
  %502 = vperm.xlu0 %501, %v380
  %v503 = vpop.permute.xlu0 %502
  %506 = vset.pattern.permute.xlu0 0
  %507 = vperm.xlu0 %506, %v381
  %v508 = vpop.permute.xlu0 %507
  %v510 = vmul.f32 %v492, %v503
  %v511 = vmul.f32 %v493, %v503
  %v512 = vmul.f32 %v494, %v508
  %v513 = vmul.f32 %v495, %v508
  %v514 = vmul.f32 %v496, %v503
  %v515 = vmul.f32 %v497, %v503
  %v516 = vmul.f32 %v498, %v508
  %v517 = vmul.f32 %v499, %v508
  %v518 = vadd.f32 %v455, %v510
  %v519 = vadd.f32 %v456, %v511
  %v520 = vadd.f32 %v457, %v512
  %v521 = vadd.f32 %v458, %v513
  %v522 = vadd.f32 %v459, %v514
  %v523 = vadd.f32 %v460, %v515
  %v524 = vadd.f32 %v461, %v516
  %v525 = vadd.f32 %v462, %v517
  %526 = vrot.lane.b32.xlu0 %v357, 15
  %v527 = vpop.permute.xlu0 %526
  %528 = vrot.lane.b32.xlu0 %v359, 15
  %v529 = vpop.permute.xlu0 %528
  %530 = vrot.lane.b32.xlu0 %v361, 15
  %v531 = vpop.permute.xlu0 %530
  %532 = vrot.lane.b32.xlu0 %v363, 15
  %v533 = vpop.permute.xlu0 %532
  %534 = vrot.lane.b32.xlu0 %v358, 15
  %v535 = vpop.permute.xlu0 %534
  %536 = vrot.lane.b32.xlu0 %v360, 15
  %v537 = vpop.permute.xlu0 %536
  %538 = vrot.lane.b32.xlu0 %v362, 15
  %v539 = vpop.permute.xlu0 %538
  %540 = vrot.lane.b32.xlu0 %v364, 15
  %v541 = vpop.permute.xlu0 %540
  %vm542 = vcmp.lt.s32.totalorder %v366, 15
  %v543 = vsel %vm542, %v527, %v535
  %v544 = vsel %vm542, %v529, %v537
  %v545 = vsel %vm542, %v531, %v539
  %v546 = vsel %vm542, %v533, %v541
  %v547 = vsel %vm542, %v535, %v527
  %v548 = vsel %vm542, %v537, %v529
  %v549 = vsel %vm542, %v539, %v531
  %v550 = vsel %vm542, %v541, %v533
  %vm551 = vmand %vm374, %vm372
  %vm552 = vmand %vm375, %vm373
  %v553 = vsel %vm551, 1, 0
  %v554 = vsel %vm552, 1, 0
  %vm555 = vcmp.eq.s32.totalorder %v553, 1
  %vm556 = vcmp.eq.s32.totalorder %v554, 1
  %v557 = vsel %vm555, %v547, 0.0
  %v558 = vsel %vm556, %v543, 0.0
  %v559 = vsel %vm555, %v548, 0.0
  %v560 = vsel %vm556, %v544, 0.0
  %v561 = vsel %vm555, %v549, 0.0
  %v562 = vsel %vm556, %v545, 0.0
  %v563 = vsel %vm555, %v550, 0.0
  %v564 = vsel %vm556, %v546, 0.0
  %566 = vset.pattern.permute.xlu0 0
  %567 = vperm.xlu0 %566, %v382
  %v568 = vpop.permute.xlu0 %567
  %571 = vset.pattern.permute.xlu0 0
  %572 = vperm.xlu0 %571, %v383
  %v573 = vpop.permute.xlu0 %572
  %v575 = vmul.f32 %v557, %v568
  %v576 = vmul.f32 %v558, %v568
  %v577 = vmul.f32 %v559, %v573
  %v578 = vmul.f32 %v560, %v573
  %v579 = vmul.f32 %v561, %v568
  %v580 = vmul.f32 %v562, %v568
  %v581 = vmul.f32 %v563, %v573
  %v582 = vmul.f32 %v564, %v573
  %v583 = vadd.f32 %v518, %v575
  %v584 = vadd.f32 %v519, %v576
  %v585 = vadd.f32 %v520, %v577
  %v586 = vadd.f32 %v521, %v578
  %v587 = vadd.f32 %v522, %v579
  %v588 = vadd.f32 %v523, %v580
  %v589 = vadd.f32 %v524, %v581
  %v590 = vadd.f32 %v525, %v582
  %591 = vrot.lane.b32.xlu0 %v357, 1
  %v592 = vpop.permute.xlu0 %591
  %593 = vrot.lane.b32.xlu0 %v359, 1
  %v594 = vpop.permute.xlu0 %593
  %595 = vrot.lane.b32.xlu0 %v361, 1
  %v596 = vpop.permute.xlu0 %595
  %597 = vrot.lane.b32.xlu0 %v363, 1
  %v598 = vpop.permute.xlu0 %597
  %599 = vrot.lane.b32.xlu0 %v358, 1
  %v600 = vpop.permute.xlu0 %599
  %601 = vrot.lane.b32.xlu0 %v360, 1
  %v602 = vpop.permute.xlu0 %601
  %603 = vrot.lane.b32.xlu0 %v362, 1
  %v604 = vpop.permute.xlu0 %603
  %605 = vrot.lane.b32.xlu0 %v364, 1
  %v606 = vpop.permute.xlu0 %605
  %vm607 = vcmp.lt.s32.totalorder %v366, 1
  %v608 = vsel %vm607, %v592, %v600
  %v609 = vsel %vm607, %v594, %v602
  %v610 = vsel %vm607, %v596, %v604
  %v611 = vsel %vm607, %v598, %v606
  %v612 = vsel %vm607, %v600, %v592
  %v613 = vsel %vm607, %v602, %v594
  %v614 = vsel %vm607, %v604, %v596
  %v615 = vsel %vm607, %v606, %v598
  %v616 = vsel %vm370, 1, 0
  %v617 = vsel %vm371, 1, 0
  %vm618 = vcmp.eq.s32.totalorder %v616, 1
  %vm619 = vcmp.eq.s32.totalorder %v617, 1
  %v620 = vsel %vm618, %v612, 0.0
  %v621 = vsel %vm619, %v608, 0.0
  %v622 = vsel %vm618, %v613, 0.0
  %v623 = vsel %vm619, %v609, 0.0
  %v624 = vsel %vm618, %v614, 0.0
  %v625 = vsel %vm619, %v610, 0.0
  %v626 = vsel %vm618, %v615, 0.0
  %v627 = vsel %vm619, %v611, 0.0
  %629 = vset.pattern.permute.xlu0 0
  %630 = vperm.xlu0 %629, %v384
  %v631 = vpop.permute.xlu0 %630
  %634 = vset.pattern.permute.xlu0 0
  %635 = vperm.xlu0 %634, %v385
  %v636 = vpop.permute.xlu0 %635
  %v638 = vmul.f32 %v620, %v631
  %v639 = vmul.f32 %v621, %v631
  %v640 = vmul.f32 %v622, %v636
  %v641 = vmul.f32 %v623, %v636
  %v642 = vmul.f32 %v624, %v631
  %v643 = vmul.f32 %v625, %v631
  %v644 = vmul.f32 %v626, %v636
  %v645 = vmul.f32 %v627, %v636
  %v646 = vadd.f32 %v583, %v638
  %v647 = vadd.f32 %v584, %v639
  %v648 = vadd.f32 %v585, %v640
  %v649 = vadd.f32 %v586, %v641
  %v650 = vadd.f32 %v587, %v642
  %v651 = vadd.f32 %v588, %v643
  %v652 = vadd.f32 %v589, %v644
  %v653 = vadd.f32 %v590, %v645
  %655 = vset.pattern.permute.xlu0 0
  %656 = vperm.xlu0 %655, %v386
  %v657 = vpop.permute.xlu0 %656
  %660 = vset.pattern.permute.xlu0 0
  %661 = vperm.xlu0 %660, %v387
  %v662 = vpop.permute.xlu0 %661
  %v664 = vmul.f32 %v357, %v657
  %v665 = vmul.f32 %v358, %v657
  %v666 = vmul.f32 %v359, %v662
  %v667 = vmul.f32 %v360, %v662
  %v668 = vmul.f32 %v361, %v657
  %v669 = vmul.f32 %v362, %v657
  %v670 = vmul.f32 %v363, %v662
  %v671 = vmul.f32 %v364, %v662
  %v672 = vadd.f32 %v646, %v664
  %v673 = vadd.f32 %v647, %v665
  %v674 = vadd.f32 %v648, %v666
  %v675 = vadd.f32 %v649, %v667
  %v676 = vadd.f32 %v650, %v668
  %v677 = vadd.f32 %v651, %v669
  %v678 = vadd.f32 %v652, %v670
  %v679 = vadd.f32 %v653, %v671
  %680 = vrot.lane.b32.xlu0 %v357, 127
  %v681 = vpop.permute.xlu0 %680
  %682 = vrot.lane.b32.xlu0 %v359, 127
  %v683 = vpop.permute.xlu0 %682
  %684 = vrot.lane.b32.xlu0 %v361, 127
  %v685 = vpop.permute.xlu0 %684
  %686 = vrot.lane.b32.xlu0 %v363, 127
  %v687 = vpop.permute.xlu0 %686
  %688 = vrot.lane.b32.xlu0 %v358, 127
  %v689 = vpop.permute.xlu0 %688
  %690 = vrot.lane.b32.xlu0 %v360, 127
  %v691 = vpop.permute.xlu0 %690
  %692 = vrot.lane.b32.xlu0 %v362, 127
  %v693 = vpop.permute.xlu0 %692
  %694 = vrot.lane.b32.xlu0 %v364, 127
  %v695 = vpop.permute.xlu0 %694
  %vm696 = vcmp.lt.s32.totalorder %v366, 127
  %v697 = vsel %vm696, %v681, %v689
  %v698 = vsel %vm696, %v683, %v691
  %v699 = vsel %vm696, %v685, %v693
  %v700 = vsel %vm696, %v687, %v695
  %v701 = vsel %vm696, %v689, %v681
  %v702 = vsel %vm696, %v691, %v683
  %v703 = vsel %vm696, %v693, %v685
  %v704 = vsel %vm696, %v695, %v687
  %v705 = vsel %vm372, 1, 0
  %v706 = vsel %vm373, 1, 0
  %vm707 = vcmp.eq.s32.totalorder %v705, 1
  %vm708 = vcmp.eq.s32.totalorder %v706, 1
  %v709 = vsel %vm707, %v697, 0.0
  %v710 = vsel %vm708, %v701, 0.0
  %v711 = vsel %vm707, %v698, 0.0
  %v712 = vsel %vm708, %v702, 0.0
  %v713 = vsel %vm707, %v699, 0.0
  %v714 = vsel %vm708, %v703, 0.0
  %v715 = vsel %vm707, %v700, 0.0
  %v716 = vsel %vm708, %v704, 0.0
  %718 = vset.pattern.permute.xlu0 0
  %719 = vperm.xlu0 %718, %v388
  %v720 = vpop.permute.xlu0 %719
  %723 = vset.pattern.permute.xlu0 0
  %724 = vperm.xlu0 %723, %v389
  %v725 = vpop.permute.xlu0 %724
  %v727 = vmul.f32 %v709, %v720
  %v728 = vmul.f32 %v710, %v720
  %v729 = vmul.f32 %v711, %v725
  %v730 = vmul.f32 %v712, %v725
  %v731 = vmul.f32 %v713, %v720
  %v732 = vmul.f32 %v714, %v720
  %v733 = vmul.f32 %v715, %v725
  %v734 = vmul.f32 %v716, %v725
  %v735 = vadd.f32 %v672, %v727
  %v736 = vadd.f32 %v673, %v728
  %v737 = vadd.f32 %v674, %v729
  %v738 = vadd.f32 %v675, %v730
  %v739 = vadd.f32 %v676, %v731
  %v740 = vadd.f32 %v677, %v732
  %v741 = vadd.f32 %v678, %v733
  %v742 = vadd.f32 %v679, %v734
  %743 = vrot.lane.b32.xlu0 %v357, 113
  %v744 = vpop.permute.xlu0 %743
  %745 = vrot.lane.b32.xlu0 %v359, 113
  %v746 = vpop.permute.xlu0 %745
  %747 = vrot.lane.b32.xlu0 %v361, 113
  %v748 = vpop.permute.xlu0 %747
  %749 = vrot.lane.b32.xlu0 %v363, 113
  %v750 = vpop.permute.xlu0 %749
  %751 = vrot.lane.b32.xlu0 %v358, 113
  %v752 = vpop.permute.xlu0 %751
  %753 = vrot.lane.b32.xlu0 %v360, 113
  %v754 = vpop.permute.xlu0 %753
  %755 = vrot.lane.b32.xlu0 %v362, 113
  %v756 = vpop.permute.xlu0 %755
  %757 = vrot.lane.b32.xlu0 %v364, 113
  %v758 = vpop.permute.xlu0 %757
  %vm759 = vcmp.lt.s32.totalorder %v366, 113
  %v760 = vsel %vm759, %v744, %v752
  %v761 = vsel %vm759, %v746, %v754
  %v762 = vsel %vm759, %v748, %v756
  %v763 = vsel %vm759, %v750, %v758
  %v764 = vsel %vm759, %v752, %v744
  %v765 = vsel %vm759, %v754, %v746
  %v766 = vsel %vm759, %v756, %v748
  %v767 = vsel %vm759, %v758, %v750
  %vm768 = vmand %vm376, %vm370
  %vm769 = vmand %vm377, %vm371
  %v770 = vsel %vm768, 1, 0
  %v771 = vsel %vm769, 1, 0
  %vm772 = vcmp.eq.s32.totalorder %v770, 1
  %vm773 = vcmp.eq.s32.totalorder %v771, 1
  %v774 = vsel %vm772, %v760, 0.0
  %v775 = vsel %vm773, %v764, 0.0
  %v776 = vsel %vm772, %v761, 0.0
  %v777 = vsel %vm773, %v765, 0.0
  %v778 = vsel %vm772, %v762, 0.0
  %v779 = vsel %vm773, %v766, 0.0
  %v780 = vsel %vm772, %v763, 0.0
  %v781 = vsel %vm773, %v767, 0.0
  %783 = vset.pattern.permute.xlu0 0
  %784 = vperm.xlu0 %783, %v390
  %v785 = vpop.permute.xlu0 %784
  %788 = vset.pattern.permute.xlu0 0
  %789 = vperm.xlu0 %788, %v391
  %v790 = vpop.permute.xlu0 %789
  %v792 = vmul.f32 %v774, %v785
  %v793 = vmul.f32 %v775, %v785
  %v794 = vmul.f32 %v776, %v790
  %v795 = vmul.f32 %v777, %v790
  %v796 = vmul.f32 %v778, %v785
  %v797 = vmul.f32 %v779, %v785
  %v798 = vmul.f32 %v780, %v790
  %v799 = vmul.f32 %v781, %v790
  %v800 = vadd.f32 %v735, %v792
  %v801 = vadd.f32 %v736, %v793
  %v802 = vadd.f32 %v737, %v794
  %v803 = vadd.f32 %v738, %v795
  %v804 = vadd.f32 %v739, %v796
  %v805 = vadd.f32 %v740, %v797
  %v806 = vadd.f32 %v741, %v798
  %v807 = vadd.f32 %v742, %v799
  %808 = vrot.lane.b32.xlu0 %v357, 112
  %v809 = vpop.permute.xlu0 %808
  %810 = vrot.lane.b32.xlu0 %v359, 112
  %v811 = vpop.permute.xlu0 %810
  %812 = vrot.lane.b32.xlu0 %v361, 112
  %v813 = vpop.permute.xlu0 %812
  %814 = vrot.lane.b32.xlu0 %v363, 112
  %v815 = vpop.permute.xlu0 %814
  %816 = vrot.lane.b32.xlu0 %v358, 112
  %v817 = vpop.permute.xlu0 %816
  %818 = vrot.lane.b32.xlu0 %v360, 112
  %v819 = vpop.permute.xlu0 %818
  %820 = vrot.lane.b32.xlu0 %v362, 112
  %v821 = vpop.permute.xlu0 %820
  %822 = vrot.lane.b32.xlu0 %v364, 112
  %v823 = vpop.permute.xlu0 %822
  %vm824 = vcmp.lt.s32.totalorder %v366, 112
  %v825 = vsel %vm824, %v809, %v817
  %v826 = vsel %vm824, %v811, %v819
  %v827 = vsel %vm824, %v813, %v821
  %v828 = vsel %vm824, %v815, %v823
  %v829 = vsel %vm824, %v817, %v809
  %v830 = vsel %vm824, %v819, %v811
  %v831 = vsel %vm824, %v821, %v813
  %v832 = vsel %vm824, %v823, %v815
  %v833 = vsel %vm376, 1, 0
  %v834 = vsel %vm377, 1, 0
  %vm835 = vcmp.eq.s32.totalorder %v833, 1
  %vm836 = vcmp.eq.s32.totalorder %v834, 1
  %v837 = vsel %vm835, %v825, 0.0
  %v838 = vsel %vm836, %v829, 0.0
  %v839 = vsel %vm835, %v826, 0.0
  %v840 = vsel %vm836, %v830, 0.0
  %v841 = vsel %vm835, %v827, 0.0
  %v842 = vsel %vm836, %v831, 0.0
  %v843 = vsel %vm835, %v828, 0.0
  %v844 = vsel %vm836, %v832, 0.0
  %846 = vset.pattern.permute.xlu0 0
  %847 = vperm.xlu0 %846, %v392
  %v848 = vpop.permute.xlu0 %847
  %851 = vset.pattern.permute.xlu0 0
  %852 = vperm.xlu0 %851, %v393
  %v853 = vpop.permute.xlu0 %852
  %v855 = vmul.f32 %v837, %v848
  %v856 = vmul.f32 %v838, %v848
  %v857 = vmul.f32 %v839, %v853
  %v858 = vmul.f32 %v840, %v853
  %v859 = vmul.f32 %v841, %v848
  %v860 = vmul.f32 %v842, %v848
  %v861 = vmul.f32 %v843, %v853
  %v862 = vmul.f32 %v844, %v853
  %v863 = vadd.f32 %v800, %v855
  %v864 = vadd.f32 %v801, %v856
  %v865 = vadd.f32 %v802, %v857
  %v866 = vadd.f32 %v803, %v858
  %v867 = vadd.f32 %v804, %v859
  %v868 = vadd.f32 %v805, %v860
  %v869 = vadd.f32 %v806, %v861
  %v870 = vadd.f32 %v807, %v862
  %871 = vrot.lane.b32.xlu0 %v357, 111
  %v872 = vpop.permute.xlu0 %871
  %873 = vrot.lane.b32.xlu0 %v359, 111
  %v874 = vpop.permute.xlu0 %873
  %875 = vrot.lane.b32.xlu0 %v361, 111
  %v876 = vpop.permute.xlu0 %875
  %877 = vrot.lane.b32.xlu0 %v363, 111
  %v878 = vpop.permute.xlu0 %877
  %879 = vrot.lane.b32.xlu0 %v358, 111
  %v880 = vpop.permute.xlu0 %879
  %881 = vrot.lane.b32.xlu0 %v360, 111
  %v882 = vpop.permute.xlu0 %881
  %883 = vrot.lane.b32.xlu0 %v362, 111
  %v884 = vpop.permute.xlu0 %883
  %885 = vrot.lane.b32.xlu0 %v364, 111
  %v886 = vpop.permute.xlu0 %885
  %vm887 = vcmp.lt.s32.totalorder %v366, 111
  %v888 = vsel %vm887, %v872, %v880
  %v889 = vsel %vm887, %v874, %v882
  %v890 = vsel %vm887, %v876, %v884
  %v891 = vsel %vm887, %v878, %v886
  %v892 = vsel %vm887, %v880, %v872
  %v893 = vsel %vm887, %v882, %v874
  %v894 = vsel %vm887, %v884, %v876
  %v895 = vsel %vm887, %v886, %v878
  %vm896 = vmand %vm376, %vm372
  %vm897 = vmand %vm377, %vm373
  %v898 = vsel %vm896, 1, 0
  %v899 = vsel %vm897, 1, 0
  %vm900 = vcmp.eq.s32.totalorder %v898, 1
  %vm901 = vcmp.eq.s32.totalorder %v899, 1
  %v902 = vsel %vm900, %v888, 0.0
  %v903 = vsel %vm901, %v892, 0.0
  %v904 = vsel %vm900, %v889, 0.0
  %v905 = vsel %vm901, %v893, 0.0
  %v906 = vsel %vm900, %v890, 0.0
  %v907 = vsel %vm901, %v894, 0.0
  %v908 = vsel %vm900, %v891, 0.0
  %v909 = vsel %vm901, %v895, 0.0
  %911 = vset.pattern.permute.xlu0 0
  %912 = vperm.xlu0 %911, %v394
  %v913 = vpop.permute.xlu0 %912
  %916 = vset.pattern.permute.xlu0 0
  %917 = vperm.xlu0 %916, %v395
  %v918 = vpop.permute.xlu0 %917
  %v920 = vmul.f32 %v902, %v913
  %v921 = vmul.f32 %v903, %v913
  %v922 = vmul.f32 %v904, %v918
  %v923 = vmul.f32 %v905, %v918
  %v924 = vmul.f32 %v906, %v913
  %v925 = vmul.f32 %v907, %v913
  %v926 = vmul.f32 %v908, %v918
  %v927 = vmul.f32 %v909, %v918
  %v928 = vadd.f32 %v863, %v920
  %v929 = vadd.f32 %v864, %v921
  %v930 = vadd.f32 %v865, %v922
  %v931 = vadd.f32 %v866, %v923
  %v932 = vadd.f32 %v867, %v924
  %v933 = vadd.f32 %v868, %v925
  %v934 = vadd.f32 %v869, %v926
  %v935 = vadd.f32 %v870, %v927
  %937 = vset.pattern.permute.xlu0 0
  %938 = vperm.xlu0 %937, %v396
  %v939 = vpop.permute.xlu0 %938
  %942 = vset.pattern.permute.xlu0 0
  %943 = vperm.xlu0 %942, %v397
  %v944 = vpop.permute.xlu0 %943
  %v946 = vadd.f32 %v928, %v939
  %v947 = vadd.f32 %v929, %v939
  %v948 = vadd.f32 %v930, %v944
  %v949 = vadd.f32 %v931, %v944
  %v950 = vadd.f32 %v932, %v939
  %v951 = vadd.f32 %v933, %v939
  %v952 = vadd.f32 %v934, %v944
  %v953 = vadd.f32 %v935, %v944
  %v954 = vld [vmem:[%s6] sm:$0xff]
  %v955 = vld [vmem:[%s6 + $0x8] sm:$0xff]
  %v956 = vld [vmem:[%s7] sm:$0xff]
  %v957 = vld [vmem:[%s7 + $0x8] sm:$0xff]
  %v958 = vadd.f32 %v946, %v947
  %959 = vadd.xlane.f32.xlu0 %v958
  %v960 = vpop.xlane.xlu0 %959
  %v961 = vadd.f32 %v948, %v949
  %962 = vadd.xlane.f32.xlu0 %v961
  %v963 = vpop.xlane.xlu0 %962
  %v964 = vadd.f32 %v950, %v951
  %965 = vadd.xlane.f32.xlu0 %v964
  %v966 = vpop.xlane.xlu0 %965
  %v967 = vadd.f32 %v952, %v953
  %968 = vadd.xlane.f32.xlu0 %v967
  %v969 = vpop.xlane.xlu0 %968
  %v970 = vadd.f32 %v960, %v966
  %v971 = vadd.f32 %v963, %v969
  %v972 = vmul.f32 %v946, %v946
  %v973 = vmul.f32 %v947, %v947
  %v974 = vmul.f32 %v948, %v948
  %v975 = vmul.f32 %v949, %v949
  %v976 = vmul.f32 %v950, %v950
  %v977 = vmul.f32 %v951, %v951
  %v978 = vmul.f32 %v952, %v952
  %v979 = vmul.f32 %v953, %v953
  %v980 = vadd.f32 %v972, %v973
  %981 = vadd.xlane.f32.xlu0 %v980
  %v982 = vpop.xlane.xlu0 %981
  %v983 = vadd.f32 %v974, %v975
  %984 = vadd.xlane.f32.xlu0 %v983
  %v985 = vpop.xlane.xlu0 %984
  %v986 = vadd.f32 %v976, %v977
  %987 = vadd.xlane.f32.xlu0 %v986
  %v988 = vpop.xlane.xlu0 %987
  %v989 = vadd.f32 %v978, %v979
  %990 = vadd.xlane.f32.xlu0 %v989
  %v991 = vpop.xlane.xlu0 %990
  %v992 = vadd.f32 %v982, %v988
  %v993 = vadd.f32 %v985, %v991
  %v994 = vmul.f32 %v970, 0.001953125
  %v995 = vmul.f32 %v971, 0.001953125
  %v996 = vmul.f32 %v992, 0.001953125
  %v997 = vmul.f32 %v993, 0.001953125
  %v998 = vmul.f32 %v994, %v994
  %v999 = vmul.f32 %v995, %v995
  %v1000 = vsub.f32 %v996, %v998
  %v1001 = vsub.f32 %v997, %v999
  %v1002 = vsub.f32 %v946, %v994
  %v1003 = vsub.f32 %v947, %v994
  %v1004 = vsub.f32 %v948, %v995
  %v1005 = vsub.f32 %v949, %v995
  %v1006 = vsub.f32 %v950, %v994
  %v1007 = vsub.f32 %v951, %v994
  %v1008 = vsub.f32 %v952, %v995
  %v1009 = vsub.f32 %v953, %v995
  %v1010 = vadd.f32 %v1000, 1e-05
  %v1011 = vadd.f32 %v1001, 1e-05
  %v1012 = vrsqrt.pop %v1010
  %v1013 = vrsqrt.pop %v1011
  %v1014 = vmul.f32 %v1002, %v1012
  %v1015 = vmul.f32 %v1003, %v1012
  %v1016 = vmul.f32 %v1004, %v1013
  %v1017 = vmul.f32 %v1005, %v1013
  %v1018 = vmul.f32 %v1006, %v1012
  %v1019 = vmul.f32 %v1007, %v1012
  %v1020 = vmul.f32 %v1008, %v1013
  %v1021 = vmul.f32 %v1009, %v1013
  %1023 = vset.pattern.permute.xlu0 0
  %1024 = vperm.xlu0 %1023, %v954
  %v1025 = vpop.permute.xlu0 %1024
  %1028 = vset.pattern.permute.xlu0 0
  %1029 = vperm.xlu0 %1028, %v955
  %v1030 = vpop.permute.xlu0 %1029
  %v1032 = vmul.f32 %v1014, %v1025
  %v1033 = vmul.f32 %v1015, %v1025
  %v1034 = vmul.f32 %v1016, %v1030
  %v1035 = vmul.f32 %v1017, %v1030
  %v1036 = vmul.f32 %v1018, %v1025
  %v1037 = vmul.f32 %v1019, %v1025
  %v1038 = vmul.f32 %v1020, %v1030
  %v1039 = vmul.f32 %v1021, %v1030
  %1041 = vset.pattern.permute.xlu0 0
  %1042 = vperm.xlu0 %1041, %v956
  %v1043 = vpop.permute.xlu0 %1042
  %1046 = vset.pattern.permute.xlu0 0
  %1047 = vperm.xlu0 %1046, %v957
  %v1048 = vpop.permute.xlu0 %1047
  %v1050 = vadd.f32 %v1032, %v1043
  %v1051 = vadd.f32 %v1033, %v1043
  %v1052 = vadd.f32 %v1034, %v1048
  %v1053 = vadd.f32 %v1035, %v1048
  %v1054 = vadd.f32 %v1036, %v1043
  %v1055 = vadd.f32 %v1037, %v1043
  %v1056 = vadd.f32 %v1038, %v1048
  %v1057 = vadd.f32 %v1039, %v1048
  %v1058 = vmax.f32 %v1050, 0.0
  %v1059 = vmax.f32 %v1051, 0.0
  %v1060 = vmax.f32 %v1052, 0.0
  %v1061 = vmax.f32 %v1053, 0.0
  %v1062 = vmax.f32 %v1054, 0.0
  %v1063 = vmax.f32 %v1055, 0.0
  %v1064 = vmax.f32 %v1056, 0.0
  %v1065 = vmax.f32 %v1057, 0.0
  %v1066 = vld [vmem:[%s8] sm:$0xf]
  %v1067 = vld [vmem:[%s8 + $0x4] sm:$0xf]
  %v1068 = vld [vmem:[%s8 + $0x8] sm:$0xf]
  %v1069 = vld [vmem:[%s8 + $0xc] sm:$0xf]
  %v1070 = vld [vmem:[%s8 + $0x10] sm:$0xf]
  %v1071 = vld [vmem:[%s8 + $0x14] sm:$0xf]
  %v1072 = vld [vmem:[%s8 + $0x18] sm:$0xf]
  %v1073 = vld [vmem:[%s8 + $0x1c] sm:$0xf]
  %v1074 = vld [vmem:[%s8 + $0x20] sm:$0xf]
  %v1075 = vld [vmem:[%s8 + $0x24] sm:$0xf]
  %v1076 = vld [vmem:[%s8 + $0x28] sm:$0xf]
  %v1077 = vld [vmem:[%s8 + $0x2c] sm:$0xf]
  %v1078 = vld [vmem:[%s8 + $0x30] sm:$0xf]
  %v1079 = vld [vmem:[%s8 + $0x34] sm:$0xf]
  %v1080 = vld [vmem:[%s8 + $0x38] sm:$0xf]
  %v1081 = vld [vmem:[%s8 + $0x3c] sm:$0xf]
  %v1082 = vlaneseq
  %v1083 = vshrl.u32 %v1082, 7
  %v1084 = vsub.s32 0, %v1083
  %v1085 = vrot.slane %v1058, %v1084
  %v1086 = vlaneseq
  %v1087 = vshrl.u32 %v1086, 7
  %v1088 = vsub.s32 0, %v1087
  %v1089 = vrot.slane %v1059, %v1088
  %v1090 = vlaneseq
  %v1091 = vshrl.u32 %v1090, 7
  %v1092 = vsub.s32 0, %v1091
  %v1093 = vrot.slane %v1062, %v1092
  %v1094 = vlaneseq
  %v1095 = vshrl.u32 %v1094, 7
  %v1096 = vsub.s32 0, %v1095
  %v1097 = vrot.slane %v1063, %v1096
  %1099 = vset.pattern.permute.xlu0 0
  %1100 = vperm.xlu0 %1099, %v1066
  %v1101 = vpop.permute.xlu0 %1100
  %v1103 = vmul.f32 %v1085, %v1101
  %v1104 = vmul.f32 %v1089, %v1101
  %v1105 = vmul.f32 %v1093, %v1101
  %v1106 = vmul.f32 %v1097, %v1101
  %v1107 = vadd.f32 %v1103, 0.0
  %v1108 = vadd.f32 %v1104, 0.0
  %v1109 = vadd.f32 %v1105, 0.0
  %v1110 = vadd.f32 %v1106, 0.0
  %v1111 = vlaneseq
  %v1112 = vshrl.u32 %v1111, 7
  %v1113 = vsub.s32 1, %v1112
  %v1114 = vrot.slane %v1058, %v1113
  %v1115 = vlaneseq
  %v1116 = vshrl.u32 %v1115, 7
  %v1117 = vsub.s32 1, %v1116
  %v1118 = vrot.slane %v1059, %v1117
  %v1119 = vlaneseq
  %v1120 = vshrl.u32 %v1119, 7
  %v1121 = vsub.s32 1, %v1120
  %v1122 = vrot.slane %v1062, %v1121
  %v1123 = vlaneseq
  %v1124 = vshrl.u32 %v1123, 7
  %v1125 = vsub.s32 1, %v1124
  %v1126 = vrot.slane %v1063, %v1125
  %1128 = vset.pattern.permute.xlu0 0
  %1129 = vperm.xlu0 %1128, %v1067
  %v1130 = vpop.permute.xlu0 %1129
  %v1132 = vmul.f32 %v1114, %v1130
  %v1133 = vmul.f32 %v1118, %v1130
  %v1134 = vmul.f32 %v1122, %v1130
  %v1135 = vmul.f32 %v1126, %v1130
  %v1136 = vadd.f32 %v1107, %v1132
  %v1137 = vadd.f32 %v1108, %v1133
  %v1138 = vadd.f32 %v1109, %v1134
  %v1139 = vadd.f32 %v1110, %v1135
  %v1140 = vlaneseq
  %v1141 = vshrl.u32 %v1140, 7
  %v1142 = vsub.s32 2, %v1141
  %v1143 = vrot.slane %v1058, %v1142
  %v1144 = vlaneseq
  %v1145 = vshrl.u32 %v1144, 7
  %v1146 = vsub.s32 2, %v1145
  %v1147 = vrot.slane %v1059, %v1146
  %v1148 = vlaneseq
  %v1149 = vshrl.u32 %v1148, 7
  %v1150 = vsub.s32 2, %v1149
  %v1151 = vrot.slane %v1062, %v1150
  %v1152 = vlaneseq
  %v1153 = vshrl.u32 %v1152, 7
  %v1154 = vsub.s32 2, %v1153
  %v1155 = vrot.slane %v1063, %v1154
  %1157 = vset.pattern.permute.xlu0 0
  %1158 = vperm.xlu0 %1157, %v1068
  %v1159 = vpop.permute.xlu0 %1158
  %v1161 = vmul.f32 %v1143, %v1159
  %v1162 = vmul.f32 %v1147, %v1159
  %v1163 = vmul.f32 %v1151, %v1159
  %v1164 = vmul.f32 %v1155, %v1159
  %v1165 = vadd.f32 %v1136, %v1161
  %v1166 = vadd.f32 %v1137, %v1162
  %v1167 = vadd.f32 %v1138, %v1163
  %v1168 = vadd.f32 %v1139, %v1164
  %v1169 = vlaneseq
  %v1170 = vshrl.u32 %v1169, 7
  %v1171 = vsub.s32 3, %v1170
  %v1172 = vrot.slane %v1058, %v1171
  %v1173 = vlaneseq
  %v1174 = vshrl.u32 %v1173, 7
  %v1175 = vsub.s32 3, %v1174
  %v1176 = vrot.slane %v1059, %v1175
  %v1177 = vlaneseq
  %v1178 = vshrl.u32 %v1177, 7
  %v1179 = vsub.s32 3, %v1178
  %v1180 = vrot.slane %v1062, %v1179
  %v1181 = vlaneseq
  %v1182 = vshrl.u32 %v1181, 7
  %v1183 = vsub.s32 3, %v1182
  %v1184 = vrot.slane %v1063, %v1183
  %1186 = vset.pattern.permute.xlu0 0
  %1187 = vperm.xlu0 %1186, %v1069
  %v1188 = vpop.permute.xlu0 %1187
  %v1190 = vmul.f32 %v1172, %v1188
  %v1191 = vmul.f32 %v1176, %v1188
  %v1192 = vmul.f32 %v1180, %v1188
  %v1193 = vmul.f32 %v1184, %v1188
  %v1194 = vadd.f32 %v1165, %v1190
  %v1195 = vadd.f32 %v1166, %v1191
  %v1196 = vadd.f32 %v1167, %v1192
  %v1197 = vadd.f32 %v1168, %v1193
  %v1198 = vlaneseq
  %v1199 = vshrl.u32 %v1198, 7
  %v1200 = vsub.s32 4, %v1199
  %v1201 = vrot.slane %v1058, %v1200
  %v1202 = vlaneseq
  %v1203 = vshrl.u32 %v1202, 7
  %v1204 = vsub.s32 4, %v1203
  %v1205 = vrot.slane %v1059, %v1204
  %v1206 = vlaneseq
  %v1207 = vshrl.u32 %v1206, 7
  %v1208 = vsub.s32 4, %v1207
  %v1209 = vrot.slane %v1062, %v1208
  %v1210 = vlaneseq
  %v1211 = vshrl.u32 %v1210, 7
  %v1212 = vsub.s32 4, %v1211
  %v1213 = vrot.slane %v1063, %v1212
  %1215 = vset.pattern.permute.xlu0 0
  %1216 = vperm.xlu0 %1215, %v1070
  %v1217 = vpop.permute.xlu0 %1216
  %v1219 = vmul.f32 %v1201, %v1217
  %v1220 = vmul.f32 %v1205, %v1217
  %v1221 = vmul.f32 %v1209, %v1217
  %v1222 = vmul.f32 %v1213, %v1217
  %v1223 = vadd.f32 %v1194, %v1219
  %v1224 = vadd.f32 %v1195, %v1220
  %v1225 = vadd.f32 %v1196, %v1221
  %v1226 = vadd.f32 %v1197, %v1222
  %v1227 = vlaneseq
  %v1228 = vshrl.u32 %v1227, 7
  %v1229 = vsub.s32 5, %v1228
  %v1230 = vrot.slane %v1058, %v1229
  %v1231 = vlaneseq
  %v1232 = vshrl.u32 %v1231, 7
  %v1233 = vsub.s32 5, %v1232
  %v1234 = vrot.slane %v1059, %v1233
  %v1235 = vlaneseq
  %v1236 = vshrl.u32 %v1235, 7
  %v1237 = vsub.s32 5, %v1236
  %v1238 = vrot.slane %v1062, %v1237
  %v1239 = vlaneseq
  %v1240 = vshrl.u32 %v1239, 7
  %v1241 = vsub.s32 5, %v1240
  %v1242 = vrot.slane %v1063, %v1241
  %1244 = vset.pattern.permute.xlu0 0
  %1245 = vperm.xlu0 %1244, %v1071
  %v1246 = vpop.permute.xlu0 %1245
  %v1248 = vmul.f32 %v1230, %v1246
  %v1249 = vmul.f32 %v1234, %v1246
  %v1250 = vmul.f32 %v1238, %v1246
  %v1251 = vmul.f32 %v1242, %v1246
  %v1252 = vadd.f32 %v1223, %v1248
  %v1253 = vadd.f32 %v1224, %v1249
  %v1254 = vadd.f32 %v1225, %v1250
  %v1255 = vadd.f32 %v1226, %v1251
  %v1256 = vlaneseq
  %v1257 = vshrl.u32 %v1256, 7
  %v1258 = vsub.s32 6, %v1257
  %v1259 = vrot.slane %v1058, %v1258
  %v1260 = vlaneseq
  %v1261 = vshrl.u32 %v1260, 7
  %v1262 = vsub.s32 6, %v1261
  %v1263 = vrot.slane %v1059, %v1262
  %v1264 = vlaneseq
  %v1265 = vshrl.u32 %v1264, 7
  %v1266 = vsub.s32 6, %v1265
  %v1267 = vrot.slane %v1062, %v1266
  %v1268 = vlaneseq
  %v1269 = vshrl.u32 %v1268, 7
  %v1270 = vsub.s32 6, %v1269
  %v1271 = vrot.slane %v1063, %v1270
  %1273 = vset.pattern.permute.xlu0 0
  %1274 = vperm.xlu0 %1273, %v1072
  %v1275 = vpop.permute.xlu0 %1274
  %v1277 = vmul.f32 %v1259, %v1275
  %v1278 = vmul.f32 %v1263, %v1275
  %v1279 = vmul.f32 %v1267, %v1275
  %v1280 = vmul.f32 %v1271, %v1275
  %v1281 = vadd.f32 %v1252, %v1277
  %v1282 = vadd.f32 %v1253, %v1278
  %v1283 = vadd.f32 %v1254, %v1279
  %v1284 = vadd.f32 %v1255, %v1280
  %v1285 = vlaneseq
  %v1286 = vshrl.u32 %v1285, 7
  %v1287 = vsub.s32 7, %v1286
  %v1288 = vrot.slane %v1058, %v1287
  %v1289 = vlaneseq
  %v1290 = vshrl.u32 %v1289, 7
  %v1291 = vsub.s32 7, %v1290
  %v1292 = vrot.slane %v1059, %v1291
  %v1293 = vlaneseq
  %v1294 = vshrl.u32 %v1293, 7
  %v1295 = vsub.s32 7, %v1294
  %v1296 = vrot.slane %v1062, %v1295
  %v1297 = vlaneseq
  %v1298 = vshrl.u32 %v1297, 7
  %v1299 = vsub.s32 7, %v1298
  %v1300 = vrot.slane %v1063, %v1299
  %1302 = vset.pattern.permute.xlu0 0
  %1303 = vperm.xlu0 %1302, %v1073
  %v1304 = vpop.permute.xlu0 %1303
  %v1306 = vmul.f32 %v1288, %v1304
  %v1307 = vmul.f32 %v1292, %v1304
  %v1308 = vmul.f32 %v1296, %v1304
  %v1309 = vmul.f32 %v1300, %v1304
  %v1310 = vadd.f32 %v1281, %v1306
  %v1311 = vadd.f32 %v1282, %v1307
  %v1312 = vadd.f32 %v1283, %v1308
  %v1313 = vadd.f32 %v1284, %v1309
  %v1314 = vlaneseq
  %v1315 = vshrl.u32 %v1314, 7
  %v1316 = vsub.s32 0, %v1315
  %v1317 = vrot.slane %v1060, %v1316
  %v1318 = vlaneseq
  %v1319 = vshrl.u32 %v1318, 7
  %v1320 = vsub.s32 0, %v1319
  %v1321 = vrot.slane %v1061, %v1320
  %v1322 = vlaneseq
  %v1323 = vshrl.u32 %v1322, 7
  %v1324 = vsub.s32 0, %v1323
  %v1325 = vrot.slane %v1064, %v1324
  %v1326 = vlaneseq
  %v1327 = vshrl.u32 %v1326, 7
  %v1328 = vsub.s32 0, %v1327
  %v1329 = vrot.slane %v1065, %v1328
  %1331 = vset.pattern.permute.xlu0 0
  %1332 = vperm.xlu0 %1331, %v1074
  %v1333 = vpop.permute.xlu0 %1332
  %v1335 = vmul.f32 %v1317, %v1333
  %v1336 = vmul.f32 %v1321, %v1333
  %v1337 = vmul.f32 %v1325, %v1333
  %v1338 = vmul.f32 %v1329, %v1333
  %v1339 = vadd.f32 %v1310, %v1335
  %v1340 = vadd.f32 %v1311, %v1336
  %v1341 = vadd.f32 %v1312, %v1337
  %v1342 = vadd.f32 %v1313, %v1338
  %v1343 = vlaneseq
  %v1344 = vshrl.u32 %v1343, 7
  %v1345 = vsub.s32 1, %v1344
  %v1346 = vrot.slane %v1060, %v1345
  %v1347 = vlaneseq
  %v1348 = vshrl.u32 %v1347, 7
  %v1349 = vsub.s32 1, %v1348
  %v1350 = vrot.slane %v1061, %v1349
  %v1351 = vlaneseq
  %v1352 = vshrl.u32 %v1351, 7
  %v1353 = vsub.s32 1, %v1352
  %v1354 = vrot.slane %v1064, %v1353
  %v1355 = vlaneseq
  %v1356 = vshrl.u32 %v1355, 7
  %v1357 = vsub.s32 1, %v1356
  %v1358 = vrot.slane %v1065, %v1357
  %1360 = vset.pattern.permute.xlu0 0
  %1361 = vperm.xlu0 %1360, %v1075
  %v1362 = vpop.permute.xlu0 %1361
  %v1364 = vmul.f32 %v1346, %v1362
  %v1365 = vmul.f32 %v1350, %v1362
  %v1366 = vmul.f32 %v1354, %v1362
  %v1367 = vmul.f32 %v1358, %v1362
  %v1368 = vadd.f32 %v1339, %v1364
  %v1369 = vadd.f32 %v1340, %v1365
  %v1370 = vadd.f32 %v1341, %v1366
  %v1371 = vadd.f32 %v1342, %v1367
  %v1372 = vlaneseq
  %v1373 = vshrl.u32 %v1372, 7
  %v1374 = vsub.s32 2, %v1373
  %v1375 = vrot.slane %v1060, %v1374
  %v1376 = vlaneseq
  %v1377 = vshrl.u32 %v1376, 7
  %v1378 = vsub.s32 2, %v1377
  %v1379 = vrot.slane %v1061, %v1378
  %v1380 = vlaneseq
  %v1381 = vshrl.u32 %v1380, 7
  %v1382 = vsub.s32 2, %v1381
  %v1383 = vrot.slane %v1064, %v1382
  %v1384 = vlaneseq
  %v1385 = vshrl.u32 %v1384, 7
  %v1386 = vsub.s32 2, %v1385
  %v1387 = vrot.slane %v1065, %v1386
  %1389 = vset.pattern.permute.xlu0 0
  %1390 = vperm.xlu0 %1389, %v1076
  %v1391 = vpop.permute.xlu0 %1390
  %v1393 = vmul.f32 %v1375, %v1391
  %v1394 = vmul.f32 %v1379, %v1391
  %v1395 = vmul.f32 %v1383, %v1391
  %v1396 = vmul.f32 %v1387, %v1391
  %v1397 = vadd.f32 %v1368, %v1393
  %v1398 = vadd.f32 %v1369, %v1394
  %v1399 = vadd.f32 %v1370, %v1395
  %v1400 = vadd.f32 %v1371, %v1396
  %v1401 = vlaneseq
  %v1402 = vshrl.u32 %v1401, 7
  %v1403 = vsub.s32 3, %v1402
  %v1404 = vrot.slane %v1060, %v1403
  %v1405 = vlaneseq
  %v1406 = vshrl.u32 %v1405, 7
  %v1407 = vsub.s32 3, %v1406
  %v1408 = vrot.slane %v1061, %v1407
  %v1409 = vlaneseq
  %v1410 = vshrl.u32 %v1409, 7
  %v1411 = vsub.s32 3, %v1410
  %v1412 = vrot.slane %v1064, %v1411
  %v1413 = vlaneseq
  %v1414 = vshrl.u32 %v1413, 7
  %v1415 = vsub.s32 3, %v1414
  %v1416 = vrot.slane %v1065, %v1415
  %1418 = vset.pattern.permute.xlu0 0
  %1419 = vperm.xlu0 %1418, %v1077
  %v1420 = vpop.permute.xlu0 %1419
  %v1422 = vmul.f32 %v1404, %v1420
  %v1423 = vmul.f32 %v1408, %v1420
  %v1424 = vmul.f32 %v1412, %v1420
  %v1425 = vmul.f32 %v1416, %v1420
  %v1426 = vadd.f32 %v1397, %v1422
  %v1427 = vadd.f32 %v1398, %v1423
  %v1428 = vadd.f32 %v1399, %v1424
  %v1429 = vadd.f32 %v1400, %v1425
  %v1430 = vlaneseq
  %v1431 = vshrl.u32 %v1430, 7
  %v1432 = vsub.s32 4, %v1431
  %v1433 = vrot.slane %v1060, %v1432
  %v1434 = vlaneseq
  %v1435 = vshrl.u32 %v1434, 7
  %v1436 = vsub.s32 4, %v1435
  %v1437 = vrot.slane %v1061, %v1436
  %v1438 = vlaneseq
  %v1439 = vshrl.u32 %v1438, 7
  %v1440 = vsub.s32 4, %v1439
  %v1441 = vrot.slane %v1064, %v1440
  %v1442 = vlaneseq
  %v1443 = vshrl.u32 %v1442, 7
  %v1444 = vsub.s32 4, %v1443
  %v1445 = vrot.slane %v1065, %v1444
  %1447 = vset.pattern.permute.xlu0 0
  %1448 = vperm.xlu0 %1447, %v1078
  %v1449 = vpop.permute.xlu0 %1448
  %v1451 = vmul.f32 %v1433, %v1449
  %v1452 = vmul.f32 %v1437, %v1449
  %v1453 = vmul.f32 %v1441, %v1449
  %v1454 = vmul.f32 %v1445, %v1449
  %v1455 = vadd.f32 %v1426, %v1451
  %v1456 = vadd.f32 %v1427, %v1452
  %v1457 = vadd.f32 %v1428, %v1453
  %v1458 = vadd.f32 %v1429, %v1454
  %v1459 = vlaneseq
  %v1460 = vshrl.u32 %v1459, 7
  %v1461 = vsub.s32 5, %v1460
  %v1462 = vrot.slane %v1060, %v1461
  %v1463 = vlaneseq
  %v1464 = vshrl.u32 %v1463, 7
  %v1465 = vsub.s32 5, %v1464
  %v1466 = vrot.slane %v1061, %v1465
  %v1467 = vlaneseq
  %v1468 = vshrl.u32 %v1467, 7
  %v1469 = vsub.s32 5, %v1468
  %v1470 = vrot.slane %v1064, %v1469
  %v1471 = vlaneseq
  %v1472 = vshrl.u32 %v1471, 7
  %v1473 = vsub.s32 5, %v1472
  %v1474 = vrot.slane %v1065, %v1473
  %1476 = vset.pattern.permute.xlu0 0
  %1477 = vperm.xlu0 %1476, %v1079
  %v1478 = vpop.permute.xlu0 %1477
  %v1480 = vmul.f32 %v1462, %v1478
  %v1481 = vmul.f32 %v1466, %v1478
  %v1482 = vmul.f32 %v1470, %v1478
  %v1483 = vmul.f32 %v1474, %v1478
  %v1484 = vadd.f32 %v1455, %v1480
  %v1485 = vadd.f32 %v1456, %v1481
  %v1486 = vadd.f32 %v1457, %v1482
  %v1487 = vadd.f32 %v1458, %v1483
  %v1488 = vlaneseq
  %v1489 = vshrl.u32 %v1488, 7
  %v1490 = vsub.s32 6, %v1489
  %v1491 = vrot.slane %v1060, %v1490
  %v1492 = vlaneseq
  %v1493 = vshrl.u32 %v1492, 7
  %v1494 = vsub.s32 6, %v1493
  %v1495 = vrot.slane %v1061, %v1494
  %v1496 = vlaneseq
  %v1497 = vshrl.u32 %v1496, 7
  %v1498 = vsub.s32 6, %v1497
  %v1499 = vrot.slane %v1064, %v1498
  %v1500 = vlaneseq
  %v1501 = vshrl.u32 %v1500, 7
  %v1502 = vsub.s32 6, %v1501
  %v1503 = vrot.slane %v1065, %v1502
  %1505 = vset.pattern.permute.xlu0 0
  %1506 = vperm.xlu0 %1505, %v1080
  %v1507 = vpop.permute.xlu0 %1506
  %v1509 = vmul.f32 %v1491, %v1507
  %v1510 = vmul.f32 %v1495, %v1507
  %v1511 = vmul.f32 %v1499, %v1507
  %v1512 = vmul.f32 %v1503, %v1507
  %v1513 = vadd.f32 %v1484, %v1509
  %v1514 = vadd.f32 %v1485, %v1510
  %v1515 = vadd.f32 %v1486, %v1511
  %v1516 = vadd.f32 %v1487, %v1512
  %v1517 = vlaneseq
  %v1518 = vshrl.u32 %v1517, 7
  %v1519 = vsub.s32 7, %v1518
  %v1520 = vrot.slane %v1060, %v1519
  %v1521 = vlaneseq
  %v1522 = vshrl.u32 %v1521, 7
  %v1523 = vsub.s32 7, %v1522
  %v1524 = vrot.slane %v1061, %v1523
  %v1525 = vlaneseq
  %v1526 = vshrl.u32 %v1525, 7
  %v1527 = vsub.s32 7, %v1526
  %v1528 = vrot.slane %v1064, %v1527
  %v1529 = vlaneseq
  %v1530 = vshrl.u32 %v1529, 7
  %v1531 = vsub.s32 7, %v1530
  %v1532 = vrot.slane %v1065, %v1531
  %1534 = vset.pattern.permute.xlu0 0
  %1535 = vperm.xlu0 %1534, %v1081
  %v1536 = vpop.permute.xlu0 %1535
  %v1538 = vmul.f32 %v1520, %v1536
  %v1539 = vmul.f32 %v1524, %v1536
  %v1540 = vmul.f32 %v1528, %v1536
  %v1541 = vmul.f32 %v1532, %v1536
  %v1542 = vadd.f32 %v1513, %v1538
  %v1543 = vadd.f32 %v1514, %v1539
  %v1544 = vadd.f32 %v1515, %v1540
  %v1545 = vadd.f32 %v1516, %v1541
  %v1546 = vld [vmem:[%s9] sm:$0xf]
  %v1547 = vld [vmem:[%s10] sm:$0xf]
  %vm1548 = vcmask 1043456
  %v1549 = vsel %vm1548, %v1542, 0.0
  %v1550 = vsel %vm1548, %v1543, 0.0
  %v1551 = vadd.f32 %v1549, %v1550
  %1552 = vadd.xlane.f32.xlu0 %v1551
  %v1553 = vpop.xlane.xlu0 %1552
  %v1554 = vsel %vm1548, %v1544, 0.0
  %v1555 = vsel %vm1548, %v1545, 0.0
  %v1556 = vadd.f32 %v1554, %v1555
  %1557 = vadd.xlane.f32.xlu0 %v1556
  %v1558 = vpop.xlane.xlu0 %1557
  %v1559 = vadd.f32 %v1553, %v1558
  %v1560 = vmul.f32 %v1542, %v1542
  %v1561 = vmul.f32 %v1543, %v1543
  %v1562 = vmul.f32 %v1544, %v1544
  %v1563 = vmul.f32 %v1545, %v1545
  %v1564 = vsel %vm1548, %v1560, 0.0
  %v1565 = vsel %vm1548, %v1561, 0.0
  %v1566 = vadd.f32 %v1564, %v1565
  %1567 = vadd.xlane.f32.xlu0 %v1566
  %v1568 = vpop.xlane.xlu0 %1567
  %v1569 = vsel %vm1548, %v1562, 0.0
  %v1570 = vsel %vm1548, %v1563, 0.0
  %v1571 = vadd.f32 %v1569, %v1570
  %1572 = vadd.xlane.f32.xlu0 %v1571
  %v1573 = vpop.xlane.xlu0 %1572
  %v1574 = vadd.f32 %v1568, %v1573
  %v1575 = vmul.f32 %v1559, 0.001953125
  %v1576 = vmul.f32 %v1574, 0.001953125
  %v1577 = vmul.f32 %v1575, %v1575
  %v1578 = vsub.f32 %v1576, %v1577
  %v1579 = vsub.f32 %v1542, %v1575
  %v1580 = vsub.f32 %v1543, %v1575
  %v1581 = vsub.f32 %v1544, %v1575
  %v1582 = vsub.f32 %v1545, %v1575
  %v1583 = vadd.f32 %v1578, 1e-05
  %v1584 = vrsqrt.pop %v1583
  %v1585 = vmul.f32 %v1579, %v1584
  %v1586 = vmul.f32 %v1580, %v1584
  %v1587 = vmul.f32 %v1581, %v1584
  %v1588 = vmul.f32 %v1582, %v1584
  %1590 = vset.pattern.permute.xlu0 0
  %1591 = vperm.xlu0 %1590, %v1546
  %v1592 = vpop.permute.xlu0 %1591
  %v1594 = vmul.f32 %v1585, %v1592
  %v1595 = vmul.f32 %v1586, %v1592
  %v1596 = vmul.f32 %v1587, %v1592
  %v1597 = vmul.f32 %v1588, %v1592
  %1599 = vset.pattern.permute.xlu0 0
  %1600 = vperm.xlu0 %1599, %v1547
  %v1601 = vpop.permute.xlu0 %1600
  %v1603 = vadd.f32 %v1594, %v1601
  %v1604 = vadd.f32 %v1595, %v1601
  %v1605 = vadd.f32 %v1596, %v1601
  %v1606 = vadd.f32 %v1597, %v1601
  %v1607 = vld [vmem:[%s0] sm:$0xff]
  %v1608 = vld [vmem:[%s0 + $0x8] sm:$0xff]
  %v1611 = vcombine.high %v1607, %v1607
  %v1612 = vcombine.high %v1608, %v1608
  %v1615 = vadd.f32 %v1603, %v1607
  %v1616 = vadd.f32 %v1604, %v1611
  %v1617 = vadd.f32 %v1605, %v1608
  %v1618 = vadd.f32 %v1606, %v1612
  %v1623 = vcombine.low %v1615, %v1616
  %v1624 = vcombine.low %v1617, %v1618
  %v1625 = vcombine.low %v1623, %v1624
  %v1626 = vcombine.high %v1623, %v1624
  %1629 = vst [vmem:[%s11] sm:$0xff] %v1625
  %1630 = vst [vmem:[%s11 + $0x8] sm:$0xff] %v1626
  // Predicated region
  $region46: #{inverted_residual.1} parent=0 // pred_check
    _
  $region47: #{inverted_residual.1} parent=0 // pred_check_branch
    %1632 = sbr.rel (0) target = $region49
  $region48: #{inverted_residual.1} parent=0 // pred_region
    _
  $region49: #{inverted_residual.1} parent=0 // pred_fallthru
    _
  // Predicated region
  $region50: #{inverted_residual.1} parent=0 // pred_check
    _
  $region51: #{inverted_residual.1} parent=0 // pred_check_branch
    %1634 = sbr.rel (0) target = $region53
  $region52: #{inverted_residual.1} parent=0 // pred_region
    _
  $region53: #{inverted_residual.1} parent=0 // pred_fallthru
    _

</llo_original>
